<compile_context>
chip_gen: v7x
topology: tpu7x:2x2x1
jax: 0.10.0
libtpu: 0.0.40
codegen_flags: <defaults>
</compile_context>

<pallas_src>
import math

import jax
import jax.numpy as jnp
from jax.experimental import pallas as pl
from jax.experimental.pallas import tpu as pltpu


def _round_up(n: int, m: int) -> int:
    return ((n + m - 1) // m) * m


def _default_vmem_limit() -> int:
    try:
        kind = jax.devices()[0].device_kind.lower()
    except Exception:  # pragma: no cover - be robust to odd runtimes
        return 64 * 1024 * 1024
    if "v7" in kind:
        return 32 * 1024 * 1024   # v7x: 64 MiB physical per TensorCore
    return 64 * 1024 * 1024       # v5e/v6e: 128 MiB physical


# ----------------------------- Pallas kernel ------------------------------ #
def _geb_kernel(
    x_ref,      # (TB, H)       scalar features
    v_ref,      # (L, TB, H)    vector features, component axis leading
    w1_ref,     # (H, H)        vec1_proj
    w2_ref,     # (H, O)        vec2_proj
    wu1a_ref,   # (H, I)        update_net[0] rows acting on x
    wu1b_ref,   # (H, I)        update_net[0] rows acting on vec1
    bu1_ref,    # (1, I)
    wu2x_ref,   # (I, O)        update_net[2] columns -> scalar output
    wu2g_ref,   # (I, O)        update_net[2] columns -> vector gate
    bu2x_ref,   # (1, O)
    bu2g_ref,   # (1, O)
    xo_ref,     # (TB, O)
    vo_ref,     # (L, TB, O)
):
    L, TB, H = v_ref.shape
    O = w2_ref.shape[1]

    # (L, TB, H) -> (L*TB, H) is a layout no-op (TB is a multiple of 8 sublanes).
    v_all = v_ref[...].reshape(L * TB, H)

    # vec1 = || vec1_proj(v) ||_2 over the component axis (f32 accumulation).
    pv1 = jnp.dot(v_all, w1_ref[...],
                  preferred_element_type=jnp.float32).reshape(L, TB, H)
    # TODO(synk): if a custom VJP is ever added, guard this sqrt with an eps in the bwd.
    vec1 = jnp.sqrt(jnp.sum(pv1 * pv1, axis=0))                          # (TB, H) f32

    # vec2_proj(v), kept per-component for the final gating.
    pv2 = jnp.dot(v_all, w2_ref[...],
                  preferred_element_type=jnp.float32).reshape(L, TB, O)  # f32

    # update_net[0]: Linear(2H -> I) on concat([x, vec1]) as a split matmul
    # (identical math; avoids a lane-unaligned concatenate for small H).
    x = x_ref[...]
    h = (jnp.dot(x, wu1a_ref[...], preferred_element_type=jnp.float32)
         + jnp.dot(vec1.astype(x.dtype), wu1b_ref[...],
                   preferred_element_type=jnp.float32)
         + bu1_ref[...].astype(jnp.float32))                             # (TB, I)
    h = h * jax.nn.sigmoid(h)                                            # SiLU (f32, EUP)
    hd = h.astype(wu2x_ref.dtype)

    # update_net[2]: Linear(I -> 2O), split into the two O-wide halves so no
    # lane-unaligned slicing (and no 128-padding of O) is needed.
    x_out = (jnp.dot(hd, wu2x_ref[...], preferred_element_type=jnp.float32)
             + bu2x_ref[...].astype(jnp.float32))                        # (TB, O)
    gate = (jnp.dot(hd, wu2g_ref[...], preferred_element_type=jnp.float32)
            + bu2g_ref[...].astype(jnp.float32))                         # (TB, O)

    # scalar_activation=False (module default): no activation on x_out.
    xo_ref[...] = x_out.astype(xo_ref.dtype)
    vo_ref[...] = (gate[None, :, :] * pv2).astype(vo_ref.dtype)          # one store


# --------------------- kernel-layout parameter packing --------------------- #
def prepare_kernel_params(p, dtype=None):
    """PyTorch-layout (out, in) weights -> kernel-layout (in, out) weights.

    Pass dtype=jnp.bfloat16 on v6e/v7x to halve HBM traffic for this memory-bound
    kernel (f32 accumulation is kept inside the kernel).
    """
    H = p["w_vec1"].shape[0]
    O = p["w_vec2"].shape[0]
    I = p["w_up1"].shape[0]
    dt = dtype if dtype is not None else p["w_vec1"].dtype

    wu1t = p["w_up1"].T                      # (2H, I)
    wu2t = p["w_up2"].T                      # (I, 2O)
    return {
        "w1": p["w_vec1"].T.astype(dt),      # (H, H)
        "w2": p["w_vec2"].T.astype(dt),      # (H, O)
        "wu1a": wu1t[:H].astype(dt),         # (H, I)  rows acting on x
        "wu1b": wu1t[H:].astype(dt),         # (H, I)  rows acting on vec1
        "bu1": p["b_up1"].reshape(1, I).astype(jnp.float32),
        "wu2x": wu2t[:, :O].astype(dt),      # (I, O)  scalar-output columns
        "wu2g": wu2t[:, O:].astype(dt),      # (I, O)  gate columns
        "bu2x": p["b_up2"][:O].reshape(1, O).astype(jnp.float32),
        "bu2g": p["b_up2"][O:].reshape(1, O).astype(jnp.float32),
        "H": H, "O": O, "I": I, "dtype": dt,
    }


# ------------------------------ wrapper ------------------------------------ #
def gated_equivariant_block(x, v, kp, *, block_b: int = 1024,
                            vmem_limit_bytes: int | None = None,
                            component_major_io: bool = False):
    """x: (B, H), v: (B, L, H)  ->  (B, O), (B, L, O).

    If component_major_io=True, v is taken as (L, B, H) and v_out is returned as
    (L, B, O), skipping the wrapper-side relayout entirely.
    """
    H, O, I = kp["H"], kp["O"], kp["I"]
    dt = kp["dtype"]

    if component_major_io:
        vt = v
        L, B, _ = vt.shape
    else:
        # TODO(synk): production callers should keep v component-major (L, B, H)
        # end-to-end; this transpose is an extra HBM round-trip of the largest input.
        B, L, _ = v.shape
        vt = jnp.transpose(v, (1, 0, 2))
    x = x.astype(dt)
    vt = vt.astype(dt)

    if vmem_limit_bytes is None:
        vmem_limit_bytes = _default_vmem_limit()

    # Batch tile: multiple of 32 sublanes, >=2 grid steps when possible (so
    # dimension_semantics=("parallel",) can shard across v7x's two TensorCores),
    # capped by a conservative per-row VMEM footprint estimate.
    itemsize = jnp.dtype(dt).itemsize
    bytes_per_row = (2 * itemsize * (H + L * H + O + L * O)          # dbl-buffered IO tiles
                     + 4 * (2 * L * H + 2 * L * O + H + 2 * I + 2 * O))  # f32 temporaries
    cap = max(32, ((vmem_limit_bytes // 2) // max(bytes_per_row, 1)) // 32 * 32)
    TB = _round_up(min(block_b, max(B // 2, 1)), 32)
    TB = min(TB, _round_up(B, 32), cap)
    nb = pl.cdiv(B, TB)                       # ragged tail handled by Pallas masking

    weight_keys = ("w1", "w2", "wu1a", "wu1b", "bu1", "wu2x", "wu2g", "bu2x", "bu2g")
    weights = [kp[k] for k in weight_keys]
    weight_bytes = sum(int(w.size) * jnp.dtype(w.dtype).itemsize for w in weights)
    # Constant index_maps -> weights stay VMEM-resident (DMA'd once).
    # TODO(synk): at production H/I/O, single-buffer these (pipeline_mode) or stage them
    # once into scratch to avoid double-buffering constant operands.
    weight_specs = [pl.BlockSpec(w.shape, lambda i: (0, 0)) for w in weights]

    cost = pl.CostEstimate(
        flops=int(2 * B * L * H * (H + O)          # vec1 + vec2 projections
                  + 2 * B * (2 * H) * I            # update_net[0]
                  + 2 * B * I * (2 * O)            # update_net[2]
                  + B * (3 * L * H + H + 2 * L * O + 2 * I + 4 * O)),
        transcendentals=int(B * (I + H)),          # sigmoid + sqrt
        bytes_accessed=int(itemsize * (B * H + L * B * H + B * O + L * B * O)
                           + weight_bytes),
    )

    xo, vo = pl.pallas_call(
        _geb_kernel,
        out_shape=(
            jax.ShapeDtypeStruct((B, O), dt),
            jax.ShapeDtypeStruct((L, B, O), dt),
        ),
        grid=(nb,),
        in_specs=[
            pl.BlockSpec((TB, H), lambda i: (i, 0)),          # x
            pl.BlockSpec((L, TB, H), lambda i: (0, i, 0)),    # v (component-major)
        ] + weight_specs,
        out_specs=(
            pl.BlockSpec((TB, O), lambda i: (i, 0)),
            pl.BlockSpec((L, TB, O), lambda i: (0, i, 0)),
        ),
        compiler_params=pltpu.CompilerParams(
            dimension_semantics=("parallel",),
            vmem_limit_bytes=vmem_limit_bytes,
        ),
        cost_estimate=cost,
    )(x, vt, *weights)

    if component_major_io:
        return xo, vo
    return xo, jnp.transpose(vo, (1, 0, 2))


# ---------------------- deterministic parameter init ----------------------- #
def _xavier_uniform(key, shape, dtype=jnp.float32):
    fan_out, fan_in = shape
    limit = math.sqrt(6.0 / (fan_in + fan_out))
    return jax.random.uniform(key, shape, dtype, -limit, limit)


def init_params(key, hidden_channels, out_channels, intermediate_channels=None):
    """PyTorch-layout params: nn.Linear weights stored as (out_features, in_features)."""
    H, O = hidden_channels, out_channels
    I = intermediate_channels if intermediate_channels is not None else H
    k1, k2, k3, k4, k5, k6 = jax.random.split(key, 6)
    return {
        "w_vec1": _xavier_uniform(k1, (H, H)),      # vec1_proj.weight (bias=False)
        "w_vec2": _xavier_uniform(k2, (O, H)),      # vec2_proj.weight (bias=False)
        "w_up1": _xavier_uniform(k3, (I, 2 * H)),   # update_net[0].weight
        "b_up1": 0.1 * jax.random.normal(k4, (I,), jnp.float32),
        "w_up2": _xavier_uniform(k5, (2 * O, I)),   # update_net[2].weight
        "b_up2": 0.1 * jax.random.normal(k6, (2 * O,), jnp.float32),
    }


# --------------------------- pure-JAX reference ----------------------------- #
def reference(x, v, p):
    """Matches GatedEquivariantBlock.forward with activation='silu', scalar_activation=False."""
    vec1 = jnp.linalg.norm(jnp.einsum("blh,kh->blk", v, p["w_vec1"]), axis=-2)
    vec2 = jnp.einsum("blh,oh->blo", v, p["w_vec2"])
    xc = jnp.concatenate([x, vec1], axis=-1)
    h = xc @ p["w_up1"].T + p["b_up1"]
    h = h * jax.nn.sigmoid(h)
    out = h @ p["w_up2"].T + p["b_up2"]
    O = p["w_vec2"].shape[0]
    x_out, gate = out[:, :O], out[:, O:]
    return x_out, gate[:, None, :] * vec2


# --------------------------------- main ------------------------------------ #
if __name__ == "__main__":
    B, L = 50, 3                   # batch, number of vector components
    H, O, I = 32, 16, 32           # hidden, out, intermediate channels

    key = jax.random.PRNGKey(0)
    kx, kv, kparam = jax.random.split(key, 3)
    x = jax.random.normal(kx, (B, H), jnp.float32)
    v = jax.random.normal(kv, (B, L, H), jnp.float32)

    params = init_params(kparam, H, O, I)
    kparams = prepare_kernel_params(params)    # pass dtype=jnp.bfloat16 on v6e/v7x

    # block_b=32 -> 2 grid steps with a ragged last tile (exercises pipelining + masking).
    x_out, v_out = gated_equivariant_block(x, v, kparams, block_b=32)
    jax.block_until_ready((x_out, v_out))

    x_ref, v_ref_out = reference(x, v, params)
    assert x_out.shape == (B, O) and v_out.shape == (B, L, O)
    assert jnp.allclose(x_out, x_ref, atol=1e-4, rtol=1e-4), \
        float(jnp.max(jnp.abs(x_out - x_ref)))
    assert jnp.allclose(v_out, v_ref_out, atol=1e-4, rtol=1e-4), \
        float(jnp.max(jnp.abs(v_out - v_ref_out)))

    print("KERNEL_OK")
</pallas_src>

<mosaic_0001>
module attributes {stable_mosaic.version = 11 : i64} {
  func.func @_geb_kernel(%arg0: i32, %arg1: memref<32x32xf32, #tpu.memory_space<vmem>>, %arg2: memref<3x32x32xf32, #tpu.memory_space<vmem>>, %arg3: memref<32x32xf32, #tpu.memory_space<vmem>>, %arg4: memref<32x16xf32, #tpu.memory_space<vmem>>, %arg5: memref<32x32xf32, #tpu.memory_space<vmem>>, %arg6: memref<32x32xf32, #tpu.memory_space<vmem>>, %arg7: memref<1x32xf32, #tpu.memory_space<vmem>>, %arg8: memref<32x16xf32, #tpu.memory_space<vmem>>, %arg9: memref<32x16xf32, #tpu.memory_space<vmem>>, %arg10: memref<1x16xf32, #tpu.memory_space<vmem>>, %arg11: memref<1x16xf32, #tpu.memory_space<vmem>>, %arg12: memref<32x16xf32, #tpu.memory_space<vmem>>, %arg13: memref<3x32x16xf32, #tpu.memory_space<vmem>>) attributes {dimension_semantics = [#tpu.dimension_semantics<parallel>], iteration_bounds = array<i64: 2>, scalar_prefetch = 0 : i64, scratch_operands = 0 : i64, tpu.core_type = #tpu.core_type<tc>, window_params = [{transform_indices = @transform_0, window_bounds = array<i64: 32, 32>}, {transform_indices = @transform_1, window_bounds = array<i64: 3, 32, 32>}, {pipeline_mode = #tpu.pipeline_mode<synchronous>, transform_indices = @transform_2, window_bounds = array<i64: 32, 32>}, {pipeline_mode = #tpu.pipeline_mode<synchronous>, transform_indices = @transform_3, window_bounds = array<i64: 32, 16>}, {pipeline_mode = #tpu.pipeline_mode<synchronous>, transform_indices = @transform_4, window_bounds = array<i64: 32, 32>}, {pipeline_mode = #tpu.pipeline_mode<synchronous>, transform_indices = @transform_5, window_bounds = array<i64: 32, 32>}, {pipeline_mode = #tpu.pipeline_mode<synchronous>, transform_indices = @transform_6, window_bounds = array<i64: 1, 32>}, {pipeline_mode = #tpu.pipeline_mode<synchronous>, transform_indices = @transform_7, window_bounds = array<i64: 32, 16>}, {pipeline_mode = #tpu.pipeline_mode<synchronous>, transform_indices = @transform_8, window_bounds = array<i64: 32, 16>}, {pipeline_mode = #tpu.pipeline_mode<synchronous>, transform_indices = @transform_9, window_bounds = array<i64: 1, 16>}, {pipeline_mode = #tpu.pipeline_mode<synchronous>, transform_indices = @transform_10, window_bounds = array<i64: 1, 16>}, {transform_indices = @transform_11, window_bounds = array<i64: 32, 16>}, {transform_indices = @transform_12, window_bounds = array<i64: 3, 32, 16>}]} {
    %c0 = arith.constant 0 : index
    %c0_0 = arith.constant 0 : index
    %c0_1 = arith.constant 0 : index
    %0 = vector.load %arg2[%c0, %c0_0, %c0_1] : memref<3x32x32xf32, #tpu.memory_space<vmem>>, vector<3x32x32xf32>
    %1 = vector.shape_cast %0 : vector<3x32x32xf32> to vector<96x32xf32>
    %c0_2 = arith.constant 0 : index
    %c0_3 = arith.constant 0 : index
    %2 = vector.load %arg3[%c0_2, %c0_3] : memref<32x32xf32, #tpu.memory_space<vmem>>, vector<32x32xf32>
    %cst = arith.constant dense<0.000000e+00> : vector<96x32xf32>
    %3 = tpu.matmul %1, %2, %cst {dimension_numbers = #tpu.dot_dimension_numbers<[1], [0], [0], [1], [0, 0, 1, 1], [], []>} : vector<96x32xf32>, vector<32x32xf32>, vector<96x32xf32> -> vector<96x32xf32>
    %4 = vector.shape_cast %3 : vector<96x32xf32> to vector<3x32x32xf32>
    %5 = arith.mulf %4, %4 : vector<3x32x32xf32>
    %cst_4 = arith.constant dense<0.000000e+00> : vector<32x32xf32>
    %6 = vector.multi_reduction <add>, %5, %cst_4 [0] : vector<3x32x32xf32> to vector<32x32xf32>
    %7 = math.sqrt %6 : vector<32x32xf32>
    %c0_5 = arith.constant 0 : index
    %c0_6 = arith.constant 0 : index
    %8 = vector.load %arg4[%c0_5, %c0_6] : memref<32x16xf32, #tpu.memory_space<vmem>>, vector<32x16xf32>
    %cst_7 = arith.constant dense<0.000000e+00> : vector<96x16xf32>
    %9 = tpu.matmul %1, %8, %cst_7 {dimension_numbers = #tpu.dot_dimension_numbers<[1], [0], [0], [1], [0, 0, 1, 1], [], []>} : vector<96x32xf32>, vector<32x16xf32>, vector<96x16xf32> -> vector<96x16xf32>
    %10 = vector.shape_cast %9 : vector<96x16xf32> to vector<3x32x16xf32>
    %c0_8 = arith.constant 0 : index
    %c0_9 = arith.constant 0 : index
    %11 = vector.load %arg1[%c0_8, %c0_9] : memref<32x32xf32, #tpu.memory_space<vmem>>, vector<32x32xf32>
    %c0_10 = arith.constant 0 : index
    %c0_11 = arith.constant 0 : index
    %12 = vector.load %arg5[%c0_10, %c0_11] : memref<32x32xf32, #tpu.memory_space<vmem>>, vector<32x32xf32>
    %cst_12 = arith.constant dense<0.000000e+00> : vector<32x32xf32>
    %13 = tpu.matmul %11, %12, %cst_12 {dimension_numbers = #tpu.dot_dimension_numbers<[1], [0], [0], [1], [0, 0, 1, 1], [], []>} : vector<32x32xf32>, vector<32x32xf32>, vector<32x32xf32> -> vector<32x32xf32>
    %c0_13 = arith.constant 0 : index
    %c0_14 = arith.constant 0 : index
    %14 = vector.load %arg6[%c0_13, %c0_14] : memref<32x32xf32, #tpu.memory_space<vmem>>, vector<32x32xf32>
    %cst_15 = arith.constant dense<0.000000e+00> : vector<32x32xf32>
    %15 = tpu.matmul %7, %14, %cst_15 {dimension_numbers = #tpu.dot_dimension_numbers<[1], [0], [0], [1], [0, 0, 1, 1], [], []>} : vector<32x32xf32>, vector<32x32xf32>, vector<32x32xf32> -> vector<32x32xf32>
    %16 = arith.addf %13, %15 : vector<32x32xf32>
    %c0_16 = arith.constant 0 : index
    %c0_17 = arith.constant 0 : index
    %17 = vector.load %arg7[%c0_16, %c0_17] : memref<1x32xf32, #tpu.memory_space<vmem>>, vector<1x32xf32>
    %18 = vector.broadcast %17 : vector<1x32xf32> to vector<32x32xf32>
    %19 = arith.addf %16, %18 : vector<32x32xf32>
    %20 = arith.negf %19 : vector<32x32xf32>
    %21 = math.exp %20 : vector<32x32xf32>
    %cst_18 = arith.constant 1.000000e+00 : f32
    %22 = vector.broadcast %cst_18 : f32 to vector<32x32xf32>
    %23 = arith.addf %22, %21 : vector<32x32xf32>
    %24 = arith.divf %22, %23 : vector<32x32xf32>
    %25 = arith.mulf %19, %24 : vector<32x32xf32>
    %c0_19 = arith.constant 0 : index
    %c0_20 = arith.constant 0 : index
    %26 = vector.load %arg8[%c0_19, %c0_20] : memref<32x16xf32, #tpu.memory_space<vmem>>, vector<32x16xf32>
    %cst_21 = arith.constant dense<0.000000e+00> : vector<32x16xf32>
    %27 = tpu.matmul %25, %26, %cst_21 {dimension_numbers = #tpu.dot_dimension_numbers<[1], [0], [0], [1], [0, 0, 1, 1], [], []>} : vector<32x32xf32>, vector<32x16xf32>, vector<32x16xf32> -> vector<32x16xf32>
    %c0_22 = arith.constant 0 : index
    %c0_23 = arith.constant 0 : index
    %28 = vector.load %arg10[%c0_22, %c0_23] : memref<1x16xf32, #tpu.memory_space<vmem>>, vector<1x16xf32>
    %29 = vector.broadcast %28 : vector<1x16xf32> to vector<32x16xf32>
    %30 = arith.addf %27, %29 : vector<32x16xf32>
    %c0_24 = arith.constant 0 : index
    %c0_25 = arith.constant 0 : index
    %31 = vector.load %arg9[%c0_24, %c0_25] : memref<32x16xf32, #tpu.memory_space<vmem>>, vector<32x16xf32>
    %cst_26 = arith.constant dense<0.000000e+00> : vector<32x16xf32>
    %32 = tpu.matmul %25, %31, %cst_26 {dimension_numbers = #tpu.dot_dimension_numbers<[1], [0], [0], [1], [0, 0, 1, 1], [], []>} : vector<32x32xf32>, vector<32x16xf32>, vector<32x16xf32> -> vector<32x16xf32>
    %c0_27 = arith.constant 0 : index
    %c0_28 = arith.constant 0 : index
    %33 = vector.load %arg11[%c0_27, %c0_28] : memref<1x16xf32, #tpu.memory_space<vmem>>, vector<1x16xf32>
    %34 = vector.broadcast %33 : vector<1x16xf32> to vector<32x16xf32>
    %35 = arith.addf %32, %34 : vector<32x16xf32>
    %c0_29 = arith.constant 0 : index
    %c0_30 = arith.constant 0 : index
    %36 = vector.load %arg12[%c0_29, %c0_30] : memref<32x16xf32, #tpu.memory_space<vmem>>, vector<32x16xf32>
    tpu.vector_store %arg12[%c0_29, %c0_30], %30 {strides = array<i32>} : memref<32x16xf32, #tpu.memory_space<vmem>>, vector<32x16xf32>,
    %37 = vector.shape_cast %35 : vector<32x16xf32> to vector<1x32x16xf32>
    %38 = vector.broadcast %37 : vector<1x32x16xf32> to vector<3x32x16xf32>
    %39 = arith.mulf %38, %10 : vector<3x32x16xf32>
    %c0_31 = arith.constant 0 : index
    %c0_32 = arith.constant 0 : index
    %c0_33 = arith.constant 0 : index
    %40 = vector.load %arg13[%c0_31, %c0_32, %c0_33] : memref<3x32x16xf32, #tpu.memory_space<vmem>>, vector<3x32x16xf32>
    tpu.vector_store %arg13[%c0_31, %c0_32, %c0_33], %39 {strides = array<i32>} : memref<3x32x16xf32, #tpu.memory_space<vmem>>, vector<3x32x16xf32>,
    return
  }
  func.func @transform_0(%arg0: i32) -> (i32, i32) {
    %c0_i32 = arith.constant 0 : i32
    %c0_i32_0 = arith.constant 0 : i32
    return %arg0, %c0_i32 : i32, i32
  }
  func.func @transform_1(%arg0: i32) -> (i32, i32, i32) {
    %c0_i32 = arith.constant 0 : i32
    %c0_i32_0 = arith.constant 0 : i32
    %c0_i32_1 = arith.constant 0 : i32
    return %c0_i32, %arg0, %c0_i32_0 : i32, i32, i32
  }
  func.func @transform_2(%arg0: i32) -> (i32, i32) {
    %c0_i32 = arith.constant 0 : i32
    %c0_i32_0 = arith.constant 0 : i32
    %c0_i32_1 = arith.constant 0 : i32
    return %c0_i32, %c0_i32_0 : i32, i32
  }
  func.func @transform_3(%arg0: i32) -> (i32, i32) {
    %c0_i32 = arith.constant 0 : i32
    %c0_i32_0 = arith.constant 0 : i32
    %c0_i32_1 = arith.constant 0 : i32
    return %c0_i32, %c0_i32_0 : i32, i32
  }
  func.func @transform_4(%arg0: i32) -> (i32, i32) {
    %c0_i32 = arith.constant 0 : i32
    %c0_i32_0 = arith.constant 0 : i32
    %c0_i32_1 = arith.constant 0 : i32
    return %c0_i32, %c0_i32_0 : i32, i32
  }
  func.func @transform_5(%arg0: i32) -> (i32, i32) {
    %c0_i32 = arith.constant 0 : i32
    %c0_i32_0 = arith.constant 0 : i32
    %c0_i32_1 = arith.constant 0 : i32
    return %c0_i32, %c0_i32_0 : i32, i32
  }
  func.func @transform_6(%arg0: i32) -> (i32, i32) {
    %c0_i32 = arith.constant 0 : i32
    %c0_i32_0 = arith.constant 0 : i32
    %c0_i32_1 = arith.constant 0 : i32
    return %c0_i32, %c0_i32_0 : i32, i32
  }
  func.func @transform_7(%arg0: i32) -> (i32, i32) {
    %c0_i32 = arith.constant 0 : i32
    %c0_i32_0 = arith.constant 0 : i32
    %c0_i32_1 = arith.constant 0 : i32
    return %c0_i32, %c0_i32_0 : i32, i32
  }
  func.func @transform_8(%arg0: i32) -> (i32, i32) {
    %c0_i32 = arith.constant 0 : i32
    %c0_i32_0 = arith.constant 0 : i32
    %c0_i32_1 = arith.constant 0 : i32
    return %c0_i32, %c0_i32_0 : i32, i32
  }
  func.func @transform_9(%arg0: i32) -> (i32, i32) {
    %c0_i32 = arith.constant 0 : i32
    %c0_i32_0 = arith.constant 0 : i32
    %c0_i32_1 = arith.constant 0 : i32
    return %c0_i32, %c0_i32_0 : i32, i32
  }
  func.func @transform_10(%arg0: i32) -> (i32, i32) {
    %c0_i32 = arith.constant 0 : i32
    %c0_i32_0 = arith.constant 0 : i32
    %c0_i32_1 = arith.constant 0 : i32
    return %c0_i32, %c0_i32_0 : i32, i32
  }
  func.func @transform_11(%arg0: i32) -> (i32, i32) {
    %c0_i32 = arith.constant 0 : i32
    %c0_i32_0 = arith.constant 0 : i32
    return %arg0, %c0_i32 : i32, i32
  }
  func.func @transform_12(%arg0: i32) -> (i32, i32, i32) {
    %c0_i32 = arith.constant 0 : i32
    %c0_i32_0 = arith.constant 0 : i32
    %c0_i32_1 = arith.constant 0 : i32
    return %c0_i32, %arg0, %c0_i32_0 : i32, i32, i32
  }
}

</mosaic_0001>

<llo_original>
// kernel: tpu_custom_call.1
$region0: #{tpu_custom_call.1}
  #allocation0 [shape = 'u32[]', space=smem, size = 0x4, offset = 0x4, fixed_abs, tag = 'smem constant byte address 0x4 - core index']
  #allocation1 [shape = 'u32[144,128]{1,0:T(1,128)}', space=vmem, size = 0x12000, scoped, tag = 'internal scratch']
  #allocation23 [shape = 's32[]', space=sflag, size = 0x4, offset = 0, fixed_abs, tag = 'sflag constant byte address 0x0 - dummy sync flag']
  #allocation25 [shape = 's32[]', space=sflag, size = 0x4, offset = 0, fixed_abs, tag = 'sflag constant byte address 0x0 - dummy sync flag']
  %s0 = inlined_call_operand.hbm [shape: f32[50,32], index: 0, kind: input, shape index: {}]
  %s1 = inlined_call_operand.hbm [shape: f32[3,50,32], index: 1, kind: input, shape index: {}]
  %s2 = inlined_call_operand.hbm [shape: f32[32,32], index: 2, kind: input, shape index: {}]
  %s3 = inlined_call_operand.hbm [shape: f32[32,16], index: 3, kind: input, shape index: {}]
  %s4 = inlined_call_operand.hbm [shape: f32[32,32], index: 4, kind: input, shape index: {}]
  %s5 = inlined_call_operand.hbm [shape: f32[32,32], index: 5, kind: input, shape index: {}]
  %s6 = inlined_call_operand.hbm [shape: f32[1,32], index: 6, kind: input, shape index: {}]
  %s7 = inlined_call_operand.hbm [shape: f32[32,16], index: 7, kind: input, shape index: {}]
  %s8 = inlined_call_operand.hbm [shape: f32[32,16], index: 8, kind: input, shape index: {}]
  %s9 = inlined_call_operand.hbm [shape: f32[1,16], index: 9, kind: input, shape index: {}]
  %s10 = inlined_call_operand.hbm [shape: f32[1,16], index: 10, kind: input, shape index: {}]
  %s11 = inlined_call_operand.hbm [shape: f32[50,16], index: 11, kind: output, shape index: {0}]
  %s12 = inlined_call_operand.hbm [shape: f32[3,50,16], index: 12, kind: output, shape index: {1}]
  %13 = xla_tuple %s11, %s12
  %s14 = sld [smem:[#allocation0]]
  $region129: #{tpu_custom_call.1} parent=0
    _
  %s16 = ssub.s32 1, %s14
  %s17 = scalar_select 0, %s16, %s14
  $region1: #{tpu_custom_call.1} parent=0
    #allocation2 [shape = 'u8[32768]{0}', space=vmem, size = 0x8000, scoped, tag = 'input window, operand 0']
    #allocation3 [shape = 's32[2]{0}', space=sflag, size = 0x8, scoped, tag = 'scoped memory for tpu_custom_call.1']
    #allocation4 [shape = 's32[2]{0}', space=sflag, size = 0x8, scoped, tag = 'scoped memory for tpu_custom_call.1']
    #allocation5 [shape = 'u8[98304]{0}', space=vmem, size = 0x18000, scoped, tag = 'input window, operand 1']
    #allocation6 [shape = 's32[2]{0}', space=sflag, size = 0x8, scoped, tag = 'scoped memory for tpu_custom_call.1']
    #allocation7 [shape = 'u8[16384]{0}', space=vmem, size = 0x4000, scoped, tag = 'input window, operand 2, single buffered']
    #allocation8 [shape = 'u8[16384]{0}', space=vmem, size = 0x4000, scoped, tag = 'input window, operand 3, single buffered']
    #allocation9 [shape = 's32[1]{0}', space=sflag, size = 0x4, scoped, tag = 'scoped memory for tpu_custom_call.1']
    #allocation10 [shape = 'u8[16384]{0}', space=vmem, size = 0x4000, scoped, tag = 'input window, operand 4, single buffered']
    #allocation11 [shape = 'u8[16384]{0}', space=vmem, size = 0x4000, scoped, tag = 'input window, operand 5, single buffered']
    #allocation12 [shape = 's32[1]{0}', space=sflag, size = 0x4, scoped, tag = 'scoped memory for tpu_custom_call.1']
    #allocation13 [shape = 'u8[512]{0}', space=vmem, size = 0x400, scoped, tag = 'input window, operand 6, single buffered']
    #allocation14 [shape = 'u8[16384]{0}', space=vmem, size = 0x4000, scoped, tag = 'input window, operand 7, single buffered']
    #allocation15 [shape = 's32[1]{0}', space=sflag, size = 0x4, scoped, tag = 'scoped memory for tpu_custom_call.1']
    #allocation16 [shape = 'u8[16384]{0}', space=vmem, size = 0x4000, scoped, tag = 'input window, operand 8, single buffered']
    #allocation17 [shape = 'u8[512]{0}', space=vmem, size = 0x400, scoped, tag = 'input window, operand 9, single buffered']
    #allocation18 [shape = 's32[1]{0}', space=sflag, size = 0x4, scoped, tag = 'scoped memory for tpu_custom_call.1']
    #allocation19 [shape = 'u8[512]{0}', space=vmem, size = 0x400, scoped, tag = 'input window, operand 10, single buffered']
    #allocation20 [shape = 'u8[32768]{0}', space=vmem, size = 0x8000, scoped, tag = 'output window, operand 0']
    #allocation21 [shape = 'u8[98304]{0}', space=vmem, size = 0x18000, scoped, tag = 'output window, operand 1']
    #allocation22 [shape = 's32[2]{0}', space=sflag, size = 0x8, scoped, tag = 'scoped memory for tpu_custom_call.1']
    %18 = vsyncpa [#allocation3], 0
    %s19 = scalar_lea.sflag [#allocation3], 1
    %20 = vsyncpa %s19, 0
    %21 = vsyncpa [#allocation6], 0
    %s22 = scalar_lea.sflag [#allocation6], 1
    %23 = vsyncpa %s22, 0
    %24 = vsyncpa [#allocation9], 0
    %25 = vsyncpa [#allocation12], 0
    %26 = vsyncpa [#allocation15], 0
    %27 = vsyncpa [#allocation18], 0
    %28 = vsyncpa [#allocation4], 0
    %s29 = scalar_lea.sflag [#allocation4], 1
    %30 = vsyncpa %s29, 0
    %31 = vsyncpa [#allocation22], 0
    %s32 = scalar_lea.sflag [#allocation22], 1
    %33 = vsyncpa %s32, 0
    loop: start=0, step=1, limit=4
    $region2: #{tpu_custom_call.1} parent=1 // loop_pre_header
      _
    $region3: #{tpu_custom_call.1} parent=1 // loop_header
      %s35 = sphi 0, %s39
      %p36 = scmp.ge.s32.totalorder %s35, 4
      %s45 = sphi 0, %s47
      %s48 = sphi 0, %s45
      %s49 = sphi 0, %s48
      %s65 = sphi 0, %s49
      %s71 = sphi 0, %s73
      %s74 = sphi 0, %s71
      %s75 = sphi 0, %s74
      %s91 = sphi 0, %s75
      %s95 = sphi 0, %s95
      %s97 = sphi 0, %s95
      %s98 = sphi 0, %s97
      %s112 = sphi 0, %s98
      %s116 = sphi 0, %s116
      %s118 = sphi 0, %s116
      %s119 = sphi 0, %s118
      %s133 = sphi 0, %s119
      %s137 = sphi 0, %s137
      %s139 = sphi 0, %s137
      %s140 = sphi 0, %s139
      %s154 = sphi 0, %s140
      %s158 = sphi 0, %s158
      %s160 = sphi 0, %s158
      %s161 = sphi 0, %s160
      %s175 = sphi 0, %s161
      %s179 = sphi 0, %s179
      %s181 = sphi 0, %s179
      %s182 = sphi 0, %s181
      %s196 = sphi 0, %s182
      %s200 = sphi 0, %s200
      %s202 = sphi 0, %s200
      %s203 = sphi 0, %s202
      %s217 = sphi 0, %s203
      %s221 = sphi 0, %s221
      %s223 = sphi 0, %s221
      %s224 = sphi 0, %s223
      %s238 = sphi 0, %s224
      %s242 = sphi 0, %s242
      %s244 = sphi 0, %s242
      %s245 = sphi 0, %s244
      %s259 = sphi 0, %s245
      %s263 = sphi 0, %s263
      %s265 = sphi 0, %s263
      %s266 = sphi 0, %s265
      %s280 = sphi 0, %s266
      %s286 = sphi 0, %s288
      %s289 = sphi 0, %s286
      %s290 = sphi 0, %s289
      %s306 = sphi 0, %s290
      %s312 = sphi 0, %s314
      %s315 = sphi 0, %s312
      %s316 = sphi 0, %s315
      %s332 = sphi 0, %s316
    $region4: #{tpu_custom_call.1} parent=1 // loop_header_branch
      %38 = sbr.rel (%p36) target = $region8
    $region5: #{tpu_custom_call.1} parent=1 // loop_body
      %s40 = ssub.s32 %s35, 1
      %s41 = ssub.s32 %s35, 2
      %s42 = sadd.s32 %s35, 1
      %s43 = ssub.s32 %s35, %s42
      %p44 = scmp.eq.s32.totalorder %s43, 0
      %s46 = sadd.s32 %s45, 1
      %s47 = scalar_select %p44, %s45, %s46
      %p50 = pneg %p44
      %p51 = scmp.eq.s32.totalorder %s35, 1
      %p52 = por %p50, %p51
      %p53 = scmp.ne.s32.totalorder %s45, %s48
      %p54 = scmp.eq.s32.totalorder %s35, 0
      %p55 = por %p53, %p54
      %p56 = scmp.ne.s32.totalorder %s45, %s48
      %p57 = scmp.eq.s32.totalorder %s40, 1
      %p58 = por %p56, %p57
      %p59 = scmp.ne.s32.totalorder %s48, %s49
      %p60 = scmp.eq.s32.totalorder %s40, 0
      %p61 = por %p59, %p60
      %p62 = scmp.ne.s32.totalorder %s48, %s49
      %p63 = scmp.eq.s32.totalorder %s41, 1
      %p64 = por %p62, %p63
      %p66 = scmp.ne.s32.totalorder %s49, %s65
      %p67 = scmp.eq.s32.totalorder %s41, 0
      %p68 = por %p66, %p67
      %s69 = ssub.s32 %s35, %s42
      %p70 = scmp.eq.s32.totalorder %s69, 0
      %s72 = sadd.s32 %s71, 1
      %s73 = scalar_select %p70, %s71, %s72
      %p76 = pneg %p70
      %p77 = scmp.eq.s32.totalorder %s35, 1
      %p78 = por %p76, %p77
      %p79 = scmp.ne.s32.totalorder %s71, %s74
      %p80 = scmp.eq.s32.totalorder %s35, 0
      %p81 = por %p79, %p80
      %p82 = scmp.ne.s32.totalorder %s71, %s74
      %p83 = scmp.eq.s32.totalorder %s40, 1
      %p84 = por %p82, %p83
      %p85 = scmp.ne.s32.totalorder %s74, %s75
      %p86 = scmp.eq.s32.totalorder %s40, 0
      %p87 = por %p85, %p86
      %p88 = scmp.ne.s32.totalorder %s74, %s75
      %p89 = scmp.eq.s32.totalorder %s41, 1
      %p90 = por %p88, %p89
      %p92 = scmp.ne.s32.totalorder %s75, %s91
      %p93 = scmp.eq.s32.totalorder %s41, 0
      %p94 = por %p92, %p93
      %s96 = sadd.s32 %s95, 1
      %p99 = scmp.eq.s32.totalorder %s35, 1
      %p100 = scmp.ne.s32.totalorder %s95, %s97
      %p101 = scmp.eq.s32.totalorder %s35, 0
      %p102 = por %p100, %p101
      %p103 = scmp.ne.s32.totalorder %s95, %s97
      %p104 = scmp.eq.s32.totalorder %s40, 1
      %p105 = por %p103, %p104
      %p106 = scmp.ne.s32.totalorder %s97, %s98
      %p107 = scmp.eq.s32.totalorder %s40, 0
      %p108 = por %p106, %p107
      %p109 = scmp.ne.s32.totalorder %s97, %s98
      %p110 = scmp.eq.s32.totalorder %s41, 1
      %p111 = por %p109, %p110
      %p113 = scmp.ne.s32.totalorder %s98, %s112
      %p114 = scmp.eq.s32.totalorder %s41, 0
      %p115 = por %p113, %p114
      %s117 = sadd.s32 %s116, 1
      %p120 = scmp.eq.s32.totalorder %s35, 1
      %p121 = scmp.ne.s32.totalorder %s116, %s118
      %p122 = scmp.eq.s32.totalorder %s35, 0
      %p123 = por %p121, %p122
      %p124 = scmp.ne.s32.totalorder %s116, %s118
      %p125 = scmp.eq.s32.totalorder %s40, 1
      %p126 = por %p124, %p125
      %p127 = scmp.ne.s32.totalorder %s118, %s119
      %p128 = scmp.eq.s32.totalorder %s40, 0
      %p129 = por %p127, %p128
      %p130 = scmp.ne.s32.totalorder %s118, %s119
      %p131 = scmp.eq.s32.totalorder %s41, 1
      %p132 = por %p130, %p131
      %p134 = scmp.ne.s32.totalorder %s119, %s133
      %p135 = scmp.eq.s32.totalorder %s41, 0
      %p136 = por %p134, %p135
      %s138 = sadd.s32 %s137, 1
      %p141 = scmp.eq.s32.totalorder %s35, 1
      %p142 = scmp.ne.s32.totalorder %s137, %s139
      %p143 = scmp.eq.s32.totalorder %s35, 0
      %p144 = por %p142, %p143
      %p145 = scmp.ne.s32.totalorder %s137, %s139
      %p146 = scmp.eq.s32.totalorder %s40, 1
      %p147 = por %p145, %p146
      %p148 = scmp.ne.s32.totalorder %s139, %s140
      %p149 = scmp.eq.s32.totalorder %s40, 0
      %p150 = por %p148, %p149
      %p151 = scmp.ne.s32.totalorder %s139, %s140
      %p152 = scmp.eq.s32.totalorder %s41, 1
      %p153 = por %p151, %p152
      %p155 = scmp.ne.s32.totalorder %s140, %s154
      %p156 = scmp.eq.s32.totalorder %s41, 0
      %p157 = por %p155, %p156
      %s159 = sadd.s32 %s158, 1
      %p162 = scmp.eq.s32.totalorder %s35, 1
      %p163 = scmp.ne.s32.totalorder %s158, %s160
      %p164 = scmp.eq.s32.totalorder %s35, 0
      %p165 = por %p163, %p164
      %p166 = scmp.ne.s32.totalorder %s158, %s160
      %p167 = scmp.eq.s32.totalorder %s40, 1
      %p168 = por %p166, %p167
      %p169 = scmp.ne.s32.totalorder %s160, %s161
      %p170 = scmp.eq.s32.totalorder %s40, 0
      %p171 = por %p169, %p170
      %p172 = scmp.ne.s32.totalorder %s160, %s161
      %p173 = scmp.eq.s32.totalorder %s41, 1
      %p174 = por %p172, %p173
      %p176 = scmp.ne.s32.totalorder %s161, %s175
      %p177 = scmp.eq.s32.totalorder %s41, 0
      %p178 = por %p176, %p177
      %s180 = sadd.s32 %s179, 1
      %p183 = scmp.eq.s32.totalorder %s35, 1
      %p184 = scmp.ne.s32.totalorder %s179, %s181
      %p185 = scmp.eq.s32.totalorder %s35, 0
      %p186 = por %p184, %p185
      %p187 = scmp.ne.s32.totalorder %s179, %s181
      %p188 = scmp.eq.s32.totalorder %s40, 1
      %p189 = por %p187, %p188
      %p190 = scmp.ne.s32.totalorder %s181, %s182
      %p191 = scmp.eq.s32.totalorder %s40, 0
      %p192 = por %p190, %p191
      %p193 = scmp.ne.s32.totalorder %s181, %s182
      %p194 = scmp.eq.s32.totalorder %s41, 1
      %p195 = por %p193, %p194
      %p197 = scmp.ne.s32.totalorder %s182, %s196
      %p198 = scmp.eq.s32.totalorder %s41, 0
      %p199 = por %p197, %p198
      %s201 = sadd.s32 %s200, 1
      %p204 = scmp.eq.s32.totalorder %s35, 1
      %p205 = scmp.ne.s32.totalorder %s200, %s202
      %p206 = scmp.eq.s32.totalorder %s35, 0
      %p207 = por %p205, %p206
      %p208 = scmp.ne.s32.totalorder %s200, %s202
      %p209 = scmp.eq.s32.totalorder %s40, 1
      %p210 = por %p208, %p209
      %p211 = scmp.ne.s32.totalorder %s202, %s203
      %p212 = scmp.eq.s32.totalorder %s40, 0
      %p213 = por %p211, %p212
      %p214 = scmp.ne.s32.totalorder %s202, %s203
      %p215 = scmp.eq.s32.totalorder %s41, 1
      %p216 = por %p214, %p215
      %p218 = scmp.ne.s32.totalorder %s203, %s217
      %p219 = scmp.eq.s32.totalorder %s41, 0
      %p220 = por %p218, %p219
      %s222 = sadd.s32 %s221, 1
      %p225 = scmp.eq.s32.totalorder %s35, 1
      %p226 = scmp.ne.s32.totalorder %s221, %s223
      %p227 = scmp.eq.s32.totalorder %s35, 0
      %p228 = por %p226, %p227
      %p229 = scmp.ne.s32.totalorder %s221, %s223
      %p230 = scmp.eq.s32.totalorder %s40, 1
      %p231 = por %p229, %p230
      %p232 = scmp.ne.s32.totalorder %s223, %s224
      %p233 = scmp.eq.s32.totalorder %s40, 0
      %p234 = por %p232, %p233
      %p235 = scmp.ne.s32.totalorder %s223, %s224
      %p236 = scmp.eq.s32.totalorder %s41, 1
      %p237 = por %p235, %p236
      %p239 = scmp.ne.s32.totalorder %s224, %s238
      %p240 = scmp.eq.s32.totalorder %s41, 0
      %p241 = por %p239, %p240
      %s243 = sadd.s32 %s242, 1
      %p246 = scmp.eq.s32.totalorder %s35, 1
      %p247 = scmp.ne.s32.totalorder %s242, %s244
      %p248 = scmp.eq.s32.totalorder %s35, 0
      %p249 = por %p247, %p248
      %p250 = scmp.ne.s32.totalorder %s242, %s244
      %p251 = scmp.eq.s32.totalorder %s40, 1
      %p252 = por %p250, %p251
      %p253 = scmp.ne.s32.totalorder %s244, %s245
      %p254 = scmp.eq.s32.totalorder %s40, 0
      %p255 = por %p253, %p254
      %p256 = scmp.ne.s32.totalorder %s244, %s245
      %p257 = scmp.eq.s32.totalorder %s41, 1
      %p258 = por %p256, %p257
      %p260 = scmp.ne.s32.totalorder %s245, %s259
      %p261 = scmp.eq.s32.totalorder %s41, 0
      %p262 = por %p260, %p261
      %s264 = sadd.s32 %s263, 1
      %p267 = scmp.eq.s32.totalorder %s35, 1
      %p268 = scmp.ne.s32.totalorder %s263, %s265
      %p269 = scmp.eq.s32.totalorder %s35, 0
      %p270 = por %p268, %p269
      %p271 = scmp.ne.s32.totalorder %s263, %s265
      %p272 = scmp.eq.s32.totalorder %s40, 1
      %p273 = por %p271, %p272
      %p274 = scmp.ne.s32.totalorder %s265, %s266
      %p275 = scmp.eq.s32.totalorder %s40, 0
      %p276 = por %p274, %p275
      %p277 = scmp.ne.s32.totalorder %s265, %s266
      %p278 = scmp.eq.s32.totalorder %s41, 1
      %p279 = por %p277, %p278
      %p281 = scmp.ne.s32.totalorder %s266, %s280
      %p282 = scmp.eq.s32.totalorder %s41, 0
      %p283 = por %p281, %p282
      %s284 = ssub.s32 %s35, %s42
      %p285 = scmp.eq.s32.totalorder %s284, 0
      %s287 = sadd.s32 %s286, 1
      %s288 = scalar_select %p285, %s286, %s287
      %p291 = pneg %p285
      %p292 = scmp.eq.s32.totalorder %s35, 1
      %p293 = por %p291, %p292
      %p294 = scmp.ne.s32.totalorder %s286, %s289
      %p295 = scmp.eq.s32.totalorder %s35, 0
      %p296 = por %p294, %p295
      %p297 = scmp.ne.s32.totalorder %s286, %s289
      %p298 = scmp.eq.s32.totalorder %s40, 1
      %p299 = por %p297, %p298
      %p300 = scmp.ne.s32.totalorder %s289, %s290
      %p301 = scmp.eq.s32.totalorder %s40, 0
      %p302 = por %p300, %p301
      %p303 = scmp.ne.s32.totalorder %s289, %s290
      %p304 = scmp.eq.s32.totalorder %s41, 1
      %p305 = por %p303, %p304
      %p307 = scmp.ne.s32.totalorder %s290, %s306
      %p308 = scmp.eq.s32.totalorder %s41, 0
      %p309 = por %p307, %p308
      %s310 = ssub.s32 %s35, %s42
      %p311 = scmp.eq.s32.totalorder %s310, 0
      %s313 = sadd.s32 %s312, 1
      %s314 = scalar_select %p311, %s312, %s313
      %p317 = pneg %p311
      %p318 = scmp.eq.s32.totalorder %s35, 1
      %p319 = por %p317, %p318
      %p320 = scmp.ne.s32.totalorder %s312, %s315
      %p321 = scmp.eq.s32.totalorder %s35, 0
      %p322 = por %p320, %p321
      %p323 = scmp.ne.s32.totalorder %s312, %s315
      %p324 = scmp.eq.s32.totalorder %s40, 1
      %p325 = por %p323, %p324
      %p326 = scmp.ne.s32.totalorder %s315, %s316
      %p327 = scmp.eq.s32.totalorder %s40, 0
      %p328 = por %p326, %p327
      %p329 = scmp.ne.s32.totalorder %s315, %s316
      %p330 = scmp.eq.s32.totalorder %s41, 1
      %p331 = por %p329, %p330
      %p333 = scmp.ne.s32.totalorder %s316, %s332
      %p334 = scmp.eq.s32.totalorder %s41, 0
      %p335 = por %p333, %p334
      %p336 = scmp.le.s32.totalorder 1, %s35
      %p337 = scmp.lt.s32.totalorder %s35, 3
      %p338 = pnand %p336, %p337
      %p339 = pneg %p338
      // Predicated region
      $region9: #{tpu_custom_call.1} parent=5 // pred_check
        _
      $region10: #{tpu_custom_call.1} parent=5 // pred_check_branch
        %341 = sbr.rel (%p338) target = $region12
      $region11: #{tpu_custom_call.1} parent=5 // pred_region
        %s342 = ssub.s32 %s35, 1
        // Predicated region
        $region13: #{tpu_custom_call.1} parent=11 // pred_check
          %p343 = pneg %p108
        $region14: #{tpu_custom_call.1} parent=11 // pred_check_branch
          %345 = sbr.rel (%p343) target = $region16
        $region15: #{tpu_custom_call.1} parent=11 // pred_region
          %s347 = ssub.s32 512, 512
          %348 = vsyncadd [#allocation6], %s347
          %s349 = sshll.u32 [#allocation7], 4
          %s350 = int_to_ptr.vmem [resolvable:$true] %s349
          %355 = dma.hbm_to_vmem [thread:$0]  %s2, 512, %s350, [#allocation6], 128, 128, 8
        $region16: #{tpu_custom_call.1} parent=11 // pred_fallthru
          _
        // Predicated region
        $region17: #{tpu_custom_call.1} parent=11 // pred_check
          %p356 = pneg %p129
        $region18: #{tpu_custom_call.1} parent=11 // pred_check_branch
          %358 = sbr.rel (%p356) target = $region20
        $region19: #{tpu_custom_call.1} parent=11 // pred_region
          %s360 = ssub.s32 512, 512
          %361 = vsyncadd [#allocation9], %s360
          %s362 = sshll.u32 [#allocation8], 4
          %s363 = int_to_ptr.vmem [resolvable:$true] %s362
          %368 = dma.hbm_to_vmem [thread:$0]  %s3, 512, %s363, [#allocation9], 128, 128, 8
        $region20: #{tpu_custom_call.1} parent=11 // pred_fallthru
          _
        // Predicated region
        $region21: #{tpu_custom_call.1} parent=11 // pred_check
          %p369 = pneg %p150
        $region22: #{tpu_custom_call.1} parent=11 // pred_check_branch
          %371 = sbr.rel (%p369) target = $region24
        $region23: #{tpu_custom_call.1} parent=11 // pred_region
          %s373 = ssub.s32 512, 512
          %374 = vsyncadd [#allocation9], %s373
          %s375 = sshll.u32 [#allocation10], 4
          %s376 = int_to_ptr.vmem [resolvable:$true] %s375
          %381 = dma.hbm_to_vmem [thread:$0]  %s4, 512, %s376, [#allocation9], 128, 128, 8
        $region24: #{tpu_custom_call.1} parent=11 // pred_fallthru
          _
        // Predicated region
        $region25: #{tpu_custom_call.1} parent=11 // pred_check
          %p382 = pneg %p171
        $region26: #{tpu_custom_call.1} parent=11 // pred_check_branch
          %384 = sbr.rel (%p382) target = $region28
        $region27: #{tpu_custom_call.1} parent=11 // pred_region
          %s386 = ssub.s32 512, 512
          %387 = vsyncadd [#allocation12], %s386
          %s388 = sshll.u32 [#allocation11], 4
          %s389 = int_to_ptr.vmem [resolvable:$true] %s388
          %394 = dma.hbm_to_vmem [thread:$0]  %s5, 512, %s389, [#allocation12], 128, 128, 8
        $region28: #{tpu_custom_call.1} parent=11 // pred_fallthru
          _
        // Predicated region
        $region29: #{tpu_custom_call.1} parent=11 // pred_check
          %p395 = pneg %p192
        $region30: #{tpu_custom_call.1} parent=11 // pred_check_branch
          %397 = sbr.rel (%p395) target = $region32
        $region31: #{tpu_custom_call.1} parent=11 // pred_region
          %s399 = ssub.s32 16, 16
          %400 = vsyncadd [#allocation12], %s399
          %s402 = sshll.u32 [#allocation13], 4
          %s403 = int_to_ptr.vmem [resolvable:$true] %s402
          %405 = dma.hbm_to_vmem [thread:$0]  %s6, 16, %s403, [#allocation12]
        $region32: #{tpu_custom_call.1} parent=11 // pred_fallthru
          _
        // Predicated region
        $region33: #{tpu_custom_call.1} parent=11 // pred_check
          %p406 = pneg %p213
        $region34: #{tpu_custom_call.1} parent=11 // pred_check_branch
          %408 = sbr.rel (%p406) target = $region36
        $region35: #{tpu_custom_call.1} parent=11 // pred_region
          %s410 = ssub.s32 512, 512
          %411 = vsyncadd [#allocation15], %s410
          %s412 = sshll.u32 [#allocation14], 4
          %s413 = int_to_ptr.vmem [resolvable:$true] %s412
          %418 = dma.hbm_to_vmem [thread:$0]  %s7, 512, %s413, [#allocation15], 128, 128, 8
        $region36: #{tpu_custom_call.1} parent=11 // pred_fallthru
          _
        // Predicated region
        $region37: #{tpu_custom_call.1} parent=11 // pred_check
          %p419 = pneg %p234
        $region38: #{tpu_custom_call.1} parent=11 // pred_check_branch
          %421 = sbr.rel (%p419) target = $region40
        $region39: #{tpu_custom_call.1} parent=11 // pred_region
          %s423 = ssub.s32 512, 512
          %424 = vsyncadd [#allocation15], %s423
          %s425 = sshll.u32 [#allocation16], 4
          %s426 = int_to_ptr.vmem [resolvable:$true] %s425
          %431 = dma.hbm_to_vmem [thread:$0]  %s8, 512, %s426, [#allocation15], 128, 128, 8
        $region40: #{tpu_custom_call.1} parent=11 // pred_fallthru
          _
        // Predicated region
        $region41: #{tpu_custom_call.1} parent=11 // pred_check
          %p432 = pneg %p255
        $region42: #{tpu_custom_call.1} parent=11 // pred_check_branch
          %434 = sbr.rel (%p432) target = $region44
        $region43: #{tpu_custom_call.1} parent=11 // pred_region
          %s436 = ssub.s32 16, 16
          %437 = vsyncadd [#allocation18], %s436
          %s439 = sshll.u32 [#allocation17], 4
          %s440 = int_to_ptr.vmem [resolvable:$true] %s439
          %442 = dma.hbm_to_vmem [thread:$0]  %s9, 16, %s440, [#allocation18]
        $region44: #{tpu_custom_call.1} parent=11 // pred_fallthru
          _
        // Predicated region
        $region45: #{tpu_custom_call.1} parent=11 // pred_check
          %p443 = pneg %p276
        $region46: #{tpu_custom_call.1} parent=11 // pred_check_branch
          %445 = sbr.rel (%p443) target = $region48
        $region47: #{tpu_custom_call.1} parent=11 // pred_region
          %s447 = ssub.s32 16, 16
          %448 = vsyncadd [#allocation18], %s447
          %s450 = sshll.u32 [#allocation19], 4
          %s451 = int_to_ptr.vmem [resolvable:$true] %s450
          %453 = dma.hbm_to_vmem [thread:$0]  %s10, 16, %s451, [#allocation18]
        $region48: #{tpu_custom_call.1} parent=11 // pred_fallthru
          _
      $region12: #{tpu_custom_call.1} parent=5 // pred_fallthru
        _
      %p454 = scmp.lt.s32.totalorder %s35, 2
      // Predicated region
      $region49: #{tpu_custom_call.1} parent=5 // pred_check
        %p455 = pneg %p454
      $region50: #{tpu_custom_call.1} parent=5 // pred_check_branch
        %457 = sbr.rel (%p455) target = $region52
      $region51: #{tpu_custom_call.1} parent=5 // pred_region
        // Predicated region
        $region53: #{tpu_custom_call.1} parent=51 // pred_check
          %p458 = pneg %p55
        $region54: #{tpu_custom_call.1} parent=51 // pred_check_branch
          %460 = sbr.rel (%p458) target = $region56
        $region55: #{tpu_custom_call.1} parent=51 // pred_region
          %s461 = sand.u32 %s45, 1
          %s462 = scalar_lea.sflag [#allocation3], %s461
          %s463 = sand.u32 %s45, 1
          %s464 = smul.addr %s463, 32
          %s465 = scalar_lea.vmem [#allocation2], %s464
          %s466 = smul.u32 4, %s35
          %s467 = ssub.s32 7, %s466
          %p468 = scmp.lt.s32.totalorder %s467, 4
          %s469 = scalar_select %p468, %s467, 4
          %s470 = smul.u32 128, %s469
          %s472 = ssub.s32 512, %s470
          %473 = vsyncadd %s462, %s472
          %p474 = scmp.ne.s32.totalorder 0, %s470
          %s475 = smul.addr %s466, 128
          %s476 = scalar_lea.hbm %s0, %s475
          %s477 = smul.u32 8, %s469
          %s478 = sshll.u32 %s465, 4
          %s479 = int_to_ptr.vmem [resolvable:$true] %s478
          %s480 = sshll.u32 %s477, 4
          %484 = dma.hbm_to_vmem [thread:$0]  (%p474), %s476, %s480, %s479, %s462, 128, 128, 8
        $region56: #{tpu_custom_call.1} parent=51 // pred_fallthru
          _
        // Predicated region
        $region57: #{tpu_custom_call.1} parent=51 // pred_check
          %p485 = pneg %p81
        $region58: #{tpu_custom_call.1} parent=51 // pred_check_branch
          %487 = sbr.rel (%p485) target = $region60
        $region59: #{tpu_custom_call.1} parent=51 // pred_region
          #allocation24 [shape = 'u32[6]{0}', space=smem, size = 0x18, scoped, tag = 'DMA stride descriptor']
          %s488 = sand.u32 %s35, 1
          %s489 = scalar_lea.sflag [#allocation6], %s488
          %s490 = sand.u32 %s71, 1
          %s491 = smul.addr %s490, 96
          %s492 = scalar_lea.vmem [#allocation5], %s491
          %s493 = smul.u32 4, %s35
          %s494 = ssub.s32 7, %s493
          %p495 = scmp.lt.s32.totalorder %s494, 4
          %s496 = scalar_select %p495, %s494, 4
          %s497 = smul.u32 384, %s496
          %s499 = ssub.s32 1536, %s497
          %500 = vsyncadd %s489, %s499
          %p501 = scmp.ne.s32.totalorder 0, %s497
          %s502 = smul.addr %s493, 128
          %s503 = scalar_lea.hbm %s1, %s502
          %s504 = smul.u32 8, %s496
          %s505 = smul.u32 %s504, 3
          %s507 = sshll.u32 1, 14
          %s508 = sxor.u32 4294967295, %s507
          %s510 = sld [smem:[#allocation0]]
          %s511 = sadd.s32 2, %s510
          %s513 = sshll.u32 7, 26
          %s514 = sxor.u32 4294967295, %s513
          %s515 = sand.u32 0, %s514
          %s516 = sshll.u32 %s511, 26
          %s517 = sor.u32 %s515, %s516
          %s518 = sshll.u32 %s492, 4
          %s519 = int_to_ptr.vmem [resolvable:$true] %s518
          %s520 = sshll.u32 %s505, 4
          %525 = sst [smem:[#allocation24]] 896
          %s526 = scalar_lea.smem [#allocation24], 1
          %527 = sst [smem:[%s526]] 512
          %s528 = scalar_lea.smem [#allocation24], 2
          %529 = sst [smem:[%s528]] %s496
          %s530 = scalar_lea.smem [#allocation24], 3
          %531 = sst [smem:[%s530]] 128
          %s532 = scalar_lea.smem [#allocation24], 4
          %533 = sst [smem:[%s532]] 128
          %s534 = scalar_lea.smem [#allocation24], 5
          %535 = sst [smem:[%s534]] 8
          %537 = dma.general (%p501), %s503, %s520, %s519, %s489, [#allocation23], [#allocation24], %s517, 0
        $region60: #{tpu_custom_call.1} parent=51 // pred_fallthru
          _
      $region52: #{tpu_custom_call.1} parent=5 // pred_fallthru
        _
      %p538 = scmp.le.s32.totalorder 1, %s35
      %p539 = scmp.lt.s32.totalorder %s35, 3
      %p540 = pnand %p538, %p539
      %p541 = pneg %p540
      // Predicated region
      $region61: #{tpu_custom_call.1} parent=5 // pred_check
        _
      $region62: #{tpu_custom_call.1} parent=5 // pred_check_branch
        %543 = sbr.rel (%p540) target = $region64
      $region63: #{tpu_custom_call.1} parent=5 // pred_region
        %s544 = ssub.s32 %s35, 1
        %s545 = sand.u32 %s48, 1
        %s546 = scalar_lea.sflag [#allocation3], %s545
        %s547 = sand.u32 %s48, 1
        %s548 = smul.addr %s547, 32
        %s549 = scalar_lea.vmem [#allocation2], %s548
        // Predicated region
        $region65: #{tpu_custom_call.1} parent=63 // pred_check
          %p550 = pneg %p61
        $region66: #{tpu_custom_call.1} parent=63 // pred_check_branch
          %552 = sbr.rel (%p550) target = $region68
        $region67: #{tpu_custom_call.1} parent=63 // pred_region
          %553 = dma.done %s546, 512
        $region68: #{tpu_custom_call.1} parent=63 // pred_fallthru
          _
        %s554 = sand.u32 %s40, 1
        %s555 = scalar_lea.sflag [#allocation6], %s554
        %s556 = sand.u32 %s74, 1
        %s557 = smul.addr %s556, 96
        %s558 = scalar_lea.vmem [#allocation5], %s557
        // Predicated region
        $region69: #{tpu_custom_call.1} parent=63 // pred_check
          %p559 = pneg %p87
        $region70: #{tpu_custom_call.1} parent=63 // pred_check_branch
          %561 = sbr.rel (%p559) target = $region72
        $region71: #{tpu_custom_call.1} parent=63 // pred_region
          %562 = dma.done %s555, 1536
        $region72: #{tpu_custom_call.1} parent=63 // pred_fallthru
          _
        // Predicated region
        $region73: #{tpu_custom_call.1} parent=63 // pred_check
          %p563 = pneg %p108
        $region74: #{tpu_custom_call.1} parent=63 // pred_check_branch
          %565 = sbr.rel (%p563) target = $region76
        $region75: #{tpu_custom_call.1} parent=63 // pred_region
          %566 = dma.done [#allocation6], 512
        $region76: #{tpu_custom_call.1} parent=63 // pred_fallthru
          _
        // Predicated region
        $region77: #{tpu_custom_call.1} parent=63 // pred_check
          %p567 = pneg %p129
        $region78: #{tpu_custom_call.1} parent=63 // pred_check_branch
          %569 = sbr.rel (%p567) target = $region80
        $region79: #{tpu_custom_call.1} parent=63 // pred_region
          %570 = dma.done [#allocation9], 512
        $region80: #{tpu_custom_call.1} parent=63 // pred_fallthru
          _
        // Predicated region
        $region81: #{tpu_custom_call.1} parent=63 // pred_check
          %p571 = pneg %p150
        $region82: #{tpu_custom_call.1} parent=63 // pred_check_branch
          %573 = sbr.rel (%p571) target = $region84
        $region83: #{tpu_custom_call.1} parent=63 // pred_region
          %574 = dma.done [#allocation9], 512
        $region84: #{tpu_custom_call.1} parent=63 // pred_fallthru
          _
        // Predicated region
        $region85: #{tpu_custom_call.1} parent=63 // pred_check
          %p575 = pneg %p171
        $region86: #{tpu_custom_call.1} parent=63 // pred_check_branch
          %577 = sbr.rel (%p575) target = $region88
        $region87: #{tpu_custom_call.1} parent=63 // pred_region
          %578 = dma.done [#allocation12], 512
        $region88: #{tpu_custom_call.1} parent=63 // pred_fallthru
          _
        // Predicated region
        $region89: #{tpu_custom_call.1} parent=63 // pred_check
          %p579 = pneg %p192
        $region90: #{tpu_custom_call.1} parent=63 // pred_check_branch
          %581 = sbr.rel (%p579) target = $region92
        $region91: #{tpu_custom_call.1} parent=63 // pred_region
          %582 = dma.done [#allocation12], 16
        $region92: #{tpu_custom_call.1} parent=63 // pred_fallthru
          _
        // Predicated region
        $region93: #{tpu_custom_call.1} parent=63 // pred_check
          %p583 = pneg %p213
        $region94: #{tpu_custom_call.1} parent=63 // pred_check_branch
          %585 = sbr.rel (%p583) target = $region96
        $region95: #{tpu_custom_call.1} parent=63 // pred_region
          %586 = dma.done [#allocation15], 512
        $region96: #{tpu_custom_call.1} parent=63 // pred_fallthru
          _
        // Predicated region
        $region97: #{tpu_custom_call.1} parent=63 // pred_check
          %p587 = pneg %p234
        $region98: #{tpu_custom_call.1} parent=63 // pred_check_branch
          %589 = sbr.rel (%p587) target = $region100
        $region99: #{tpu_custom_call.1} parent=63 // pred_region
          %590 = dma.done [#allocation15], 512
        $region100: #{tpu_custom_call.1} parent=63 // pred_fallthru
          _
        // Predicated region
        $region101: #{tpu_custom_call.1} parent=63 // pred_check
          %p591 = pneg %p255
        $region102: #{tpu_custom_call.1} parent=63 // pred_check_branch
          %593 = sbr.rel (%p591) target = $region104
        $region103: #{tpu_custom_call.1} parent=63 // pred_region
          %594 = dma.done [#allocation18], 16
        $region104: #{tpu_custom_call.1} parent=63 // pred_fallthru
          _
        // Predicated region
        $region105: #{tpu_custom_call.1} parent=63 // pred_check
          %p595 = pneg %p276
        $region106: #{tpu_custom_call.1} parent=63 // pred_check_branch
          %597 = sbr.rel (%p595) target = $region108
        $region107: #{tpu_custom_call.1} parent=63 // pred_region
          %598 = dma.done [#allocation18], 16
        $region108: #{tpu_custom_call.1} parent=63 // pred_fallthru
          _
        %s599 = sand.u32 %s48, 1
        %s600 = scalar_lea.sflag [#allocation3], %s599
        %s601 = sand.u32 %s48, 1
        %s602 = smul.addr %s601, 32
        %s603 = scalar_lea.vmem [#allocation2], %s602
        %p604 = pneg %p61
        %p605 = pneg %p58
        %s606 = sand.u32 %s40, 1
        %s607 = scalar_lea.sflag [#allocation6], %s606
        %s608 = sand.u32 %s74, 1
        %s609 = smul.addr %s608, 96
        %s610 = scalar_lea.vmem [#allocation5], %s609
        %p611 = pneg %p87
        %p612 = pneg %p84
        %p613 = pneg %p108
        %p614 = pneg %p105
        %p615 = pneg %p129
        %p616 = pneg %p126
        %p617 = pneg %p150
        %p618 = pneg %p147
        %p619 = pneg %p171
        %p620 = pneg %p168
        %p621 = pneg %p192
        %p622 = pneg %p189
        %p623 = pneg %p213
        %p624 = pneg %p210
        %p625 = pneg %p234
        %p626 = pneg %p231
        %p627 = pneg %p255
        %p628 = pneg %p252
        %p629 = pneg %p276
        %p630 = pneg %p273
        %p631 = pneg %p302
        %p632 = pneg %p299
        %s633 = sand.u32 %s289, 1
        %s634 = scalar_lea.sflag [#allocation4], %s633
        %s635 = sand.u32 %s289, 1
        %s636 = smul.addr %s635, 32
        %s637 = scalar_lea.vmem [#allocation20], %s636
        %p638 = pneg %p328
        %p639 = pneg %p325
        %s640 = sand.u32 %s315, 1
        %s641 = scalar_lea.sflag [#allocation22], %s640
        %s642 = sand.u32 %s315, 1
        %s643 = smul.addr %s642, 96
        %s644 = scalar_lea.vmem [#allocation21], %s643
        %s645 = smul.u32 4, %s40
        %s646 = ssub.s32 7, %s645
        %p647 = scmp.lt.s32.totalorder %s646, 4
        %s648 = scalar_select %p647, %s646, 4
        %s649 = smul.u32 128, %s648
        %s650 = smul.u32 4, %s40
        %s651 = ssub.s32 7, %s650
        %p652 = scmp.lt.s32.totalorder %s651, 4
        %s653 = scalar_select %p652, %s651, 4
        %s654 = smul.u32 384, %s653
        %s655 = smul.u32 4, %s40
        %s656 = ssub.s32 7, %s655
        %p657 = scmp.lt.s32.totalorder %s656, 4
        %s658 = scalar_select %p657, %s656, 4
        %s659 = smul.u32 128, %s658
        %s660 = smul.u32 4, %s40
        %s661 = ssub.s32 7, %s660
        %p662 = scmp.lt.s32.totalorder %s661, 4
        %s663 = scalar_select %p662, %s661, 4
        %s664 = smul.u32 384, %s663
        %v665 = vld [vmem:[%s558] sm:$0xff]
        %v666 = vld [vmem:[%s558 + $0x8] sm:$0xff]
        %v667 = vld [vmem:[%s558 + $0x10] sm:$0xff]
        %v668 = vld [vmem:[%s558 + $0x18] sm:$0xff]
        %v669 = vld [vmem:[%s558 + $0x20] sm:$0xff]
        %v670 = vld [vmem:[%s558 + $0x28] sm:$0xff]
        %v671 = vld [vmem:[%s558 + $0x30] sm:$0xff]
        %v672 = vld [vmem:[%s558 + $0x38] sm:$0xff]
        %v673 = vld [vmem:[%s558 + $0x40] sm:$0xff]
        %v674 = vld [vmem:[%s558 + $0x48] sm:$0xff]
        %v675 = vld [vmem:[%s558 + $0x50] sm:$0xff]
        %v676 = vld [vmem:[%s558 + $0x58] sm:$0xff]
        %v677 = vld [vmem:[#allocation7] sm:$0xff]
        %v678 = vld [vmem:[#allocation7 + $0x8] sm:$0xff]
        %v679 = vld [vmem:[#allocation7 + $0x10] sm:$0xff]
        %v680 = vld [vmem:[#allocation7 + $0x18] sm:$0xff]
        %vm681 = vcmask 261120
        %v683 = vsel %vm681, %v665, 0
        %v686 = vsel %vm681, %v666, 0
        %v689 = vsel %vm681, %v667, 0
        %v692 = vsel %vm681, %v668, 0
        %v695 = vsel %vm681, %v669, 0
        %v698 = vsel %vm681, %v670, 0
        %v701 = vsel %vm681, %v671, 0
        %v704 = vsel %vm681, %v672, 0
        %v707 = vsel %vm681, %v673, 0
        %v710 = vsel %vm681, %v674, 0
        %v713 = vsel %vm681, %v675, 0
        %v716 = vsel %vm681, %v676, 0
        %718 = vmatprep.subr.mxu0 0.0
        %719 = vmatpush1.msra.mxu0 %v677
        %720 = vmatprep.subr.mxu0 0.0
        %721 = vmatpush1.msra.mxu0 %v678
        %722 = vmatprep.subr.mxu0 0.0
        %723 = vmatpush1.msra.mxu0 %v679
        %724 = vmatprep.subr.mxu0 0.0
        %725 = vmatpush1.msra.mxu0 %v680
        %726 = vmatprep.subr.mxu0 0.0
        %727 = vmatpush1.msra.mxu0 0.0
        %728 = vmatprep.subr.mxu0 0.0
        %729 = vmatpush1.msra.mxu0 0.0
        %730 = vmatprep.subr.mxu0 0.0
        %731 = vmatpush1.msra.mxu0 0.0
        %732 = vmatprep.subr.mxu0 0.0
        %733 = vmatpush1.msra.mxu0 0.0
        %734 = vmatprep.subr.mxu0 0.0
        %735 = vmatpush1.msra.mxu0 0.0
        %736 = vmatprep.subr.mxu0 0.0
        %737 = vmatpush1.msra.mxu0 0.0
        %738 = vmatprep.subr.mxu0 0.0
        %739 = vmatpush1.msra.mxu0 0.0
        %740 = vmatprep.subr.mxu0 0.0
        %741 = vmatpush1.msra.mxu0 0.0
        %742 = vmatprep.subr.mxu0 0.0
        %743 = vmatpush1.msra.mxu0 0.0
        %744 = vmatprep.subr.mxu0 0.0
        %745 = vmatpush1.msra.mxu0 0.0
        %746 = vmatprep.subr.mxu0 0.0
        %747 = vmatpush1.msra.mxu0 0.0
        %748 = vmatprep.subr.mxu0 0.0
        %749 = vmatpush1.msra.mxu0 0.0
        %750 = vmatprep.subr.mxu0 0.0
        %751 = vmatpush1.msra.mxu0 0.0
        %752 = vmatprep.subr.mxu0 0.0
        %753 = vmatpush1.msra.mxu0 0.0
        %754 = vmatprep.subr.mxu0 0.0
        %755 = vmatpush1.msra.mxu0 0.0
        %756 = vmatprep.subr.mxu0 0.0
        %757 = vmatpush1.msra.mxu0 0.0
        %758 = vmatprep.subr.mxu0 0.0
        %759 = vmatpush1.msra.mxu0 0.0
        %760 = vmatprep.subr.mxu0 0.0
        %761 = vmatpush1.msra.mxu0 0.0
        %762 = vmatprep.subr.mxu0 0.0
        %763 = vmatpush1.msra.mxu0 0.0
        %764 = vmatprep.subr.mxu0 0.0
        %765 = vmatpush1.msra.mxu0 0.0
        %766 = vmatprep.subr.mxu0 0.0
        %767 = vmatpush1.msra.mxu0 0.0
        %768 = vmatprep.subr.mxu0 0.0
        %769 = vmatpush1.msra.mxu0 0.0
        %770 = vmatprep.subr.mxu0 0.0
        %771 = vmatpush1.msra.mxu0 0.0
        %772 = vmatprep.subr.mxu0 0.0
        %773 = vmatpush1.msra.mxu0 0.0
        %774 = vmatprep.subr.mxu0 0.0
        %775 = vmatpush1.msra.mxu0 0.0
        %776 = vmatprep.subr.mxu0 0.0
        %777 = vmatpush1.msra.mxu0 0.0
        %778 = vmatprep.subr.mxu0 0.0
        %779 = vmatpush1.msra.mxu0 0.0
        %780 = vmatprep.subr.mxu0 0.0
        %781 = vmatpush1.msra.mxu0 0.0
        %782 = vmatprep.mubr.f32.mxu0 0.0
        %783 = vmatmul.mubr.f32.gmra.mrb[0].mxu0 %v683
        %v784 = vpop.f32.mrb[0].mxu0
        %v785 = vadd.f32 0.0, %v784
        %v786 = vpop.f32.mrb[0].mxu0
        %787 = vmatprep.mubr.f32.mxu0 0.0
        %788 = vmatmul.mubr.f32.gmra.mrb[0].mxu0 %v686
        %v789 = vpop.f32.mrb[0].mxu0
        %v790 = vadd.f32 0.0, %v789
        %v791 = vpop.f32.mrb[0].mxu0
        %792 = vmatprep.mubr.f32.mxu0 0.0
        %793 = vmatmul.mubr.f32.gmra.mrb[0].mxu0 %v689
        %v794 = vpop.f32.mrb[0].mxu0
        %v795 = vadd.f32 0.0, %v794
        %v796 = vpop.f32.mrb[0].mxu0
        %797 = vmatprep.mubr.f32.mxu0 0.0
        %798 = vmatmul.mubr.f32.gmra.mrb[0].mxu0 %v692
        %v799 = vpop.f32.mrb[0].mxu0
        %v800 = vadd.f32 0.0, %v799
        %v801 = vpop.f32.mrb[0].mxu0
        %802 = vmatprep.mubr.f32.mxu0 0.0
        %803 = vmatmul.mubr.f32.gmra.mrb[0].mxu0 %v695
        %v804 = vpop.f32.mrb[0].mxu0
        %v805 = vadd.f32 0.0, %v804
        %v806 = vpop.f32.mrb[0].mxu0
        %807 = vmatprep.mubr.f32.mxu0 0.0
        %808 = vmatmul.mubr.f32.gmra.mrb[0].mxu0 %v698
        %v809 = vpop.f32.mrb[0].mxu0
        %v810 = vadd.f32 0.0, %v809
        %v811 = vpop.f32.mrb[0].mxu0
        %812 = vmatprep.mubr.f32.mxu0 0.0
        %813 = vmatmul.mubr.f32.gmra.mrb[0].mxu0 %v701
        %v814 = vpop.f32.mrb[0].mxu0
        %v815 = vadd.f32 0.0, %v814
        %v816 = vpop.f32.mrb[0].mxu0
        %817 = vmatprep.mubr.f32.mxu0 0.0
        %818 = vmatmul.mubr.f32.gmra.mrb[0].mxu0 %v704
        %v819 = vpop.f32.mrb[0].mxu0
        %v820 = vadd.f32 0.0, %v819
        %v821 = vpop.f32.mrb[0].mxu0
        %822 = vmatprep.mubr.f32.mxu0 0.0
        %823 = vmatmul.mubr.f32.gmra.mrb[0].mxu0 %v707
        %v824 = vpop.f32.mrb[0].mxu0
        %v825 = vadd.f32 0.0, %v824
        %v826 = vpop.f32.mrb[0].mxu0
        %827 = vmatprep.mubr.f32.mxu0 0.0
        %828 = vmatmul.mubr.f32.gmra.mrb[0].mxu0 %v710
        %v829 = vpop.f32.mrb[0].mxu0
        %v830 = vadd.f32 0.0, %v829
        %v831 = vpop.f32.mrb[0].mxu0
        %832 = vmatprep.mubr.f32.mxu0 0.0
        %833 = vmatmul.mubr.f32.gmra.mrb[0].mxu0 %v713
        %v834 = vpop.f32.mrb[0].mxu0
        %v835 = vadd.f32 0.0, %v834
        %v836 = vpop.f32.mrb[0].mxu0
        %837 = vmatprep.mubr.f32.mxu0 0.0
        %838 = vmatmul.mubr.f32.gmra.mrb[0].mxu0 %v716
        %v839 = vpop.f32.mrb[0].mxu0
        %v840 = vadd.f32 0.0, %v839
        %v841 = vpop.f32.mrb[0].mxu0
        %842 = vdwg.mxu0
        %v843 = vmul.f32 %v785, %v785
        %v844 = vmul.f32 %v790, %v790
        %v845 = vmul.f32 %v795, %v795
        %v846 = vmul.f32 %v800, %v800
        %v847 = vmul.f32 %v805, %v805
        %v848 = vmul.f32 %v810, %v810
        %v849 = vmul.f32 %v815, %v815
        %v850 = vmul.f32 %v820, %v820
        %v851 = vmul.f32 %v825, %v825
        %v852 = vmul.f32 %v830, %v830
        %v853 = vmul.f32 %v835, %v835
        %v854 = vmul.f32 %v840, %v840
        %v855 = vsel %vm681, %v843, 0.0
        %v856 = vsel %vm681, %v847, 0.0
        %v857 = vadd.f32 %v855, %v856
        %v858 = vsel %vm681, %v851, 0.0
        %v859 = vadd.f32 %v857, %v858
        %v860 = vsel %vm681, %v844, 0.0
        %v861 = vsel %vm681, %v848, 0.0
        %v862 = vadd.f32 %v860, %v861
        %v863 = vsel %vm681, %v852, 0.0
        %v864 = vadd.f32 %v862, %v863
        %v865 = vsel %vm681, %v845, 0.0
        %v866 = vsel %vm681, %v849, 0.0
        %v867 = vadd.f32 %v865, %v866
        %v868 = vsel %vm681, %v853, 0.0
        %v869 = vadd.f32 %v867, %v868
        %v870 = vsel %vm681, %v846, 0.0
        %v871 = vsel %vm681, %v850, 0.0
        %v872 = vadd.f32 %v870, %v871
        %v873 = vsel %vm681, %v854, 0.0
        %v874 = vadd.f32 %v872, %v873
        %v875 = vrsqrt.pop %v859
        %v876 = vmul.f32 %v859, %v875
        %vm877 = vcmp.eq.f32.partialorder %v859, inf
        %v878 = vsel %vm877, %v859, %v876
        %vm879 = vcmp.eq.f32.partialorder %v859, 0.0
        %v880 = vand.u32 %v859, 2147483648
        %v881 = vsel %vm879, %v880, %v878
        %v882 = vrsqrt.pop %v864
        %v883 = vmul.f32 %v864, %v882
        %vm884 = vcmp.eq.f32.partialorder %v864, inf
        %v885 = vsel %vm884, %v864, %v883
        %vm886 = vcmp.eq.f32.partialorder %v864, 0.0
        %v887 = vand.u32 %v864, 2147483648
        %v888 = vsel %vm886, %v887, %v885
        %v889 = vrsqrt.pop %v869
        %v890 = vmul.f32 %v869, %v889
        %vm891 = vcmp.eq.f32.partialorder %v869, inf
        %v892 = vsel %vm891, %v869, %v890
        %vm893 = vcmp.eq.f32.partialorder %v869, 0.0
        %v894 = vand.u32 %v869, 2147483648
        %v895 = vsel %vm893, %v894, %v892
        %v896 = vrsqrt.pop %v874
        %v897 = vmul.f32 %v874, %v896
        %vm898 = vcmp.eq.f32.partialorder %v874, inf
        %v899 = vsel %vm898, %v874, %v897
        %vm900 = vcmp.eq.f32.partialorder %v874, 0.0
        %v901 = vand.u32 %v874, 2147483648
        %v902 = vsel %vm900, %v901, %v899
        %v903 = vld [vmem:[#allocation8] sm:$0xff]
        %v904 = vld [vmem:[#allocation8 + $0x8] sm:$0xff]
        %v905 = vld [vmem:[#allocation8 + $0x10] sm:$0xff]
        %v906 = vld [vmem:[#allocation8 + $0x18] sm:$0xff]
        %907 = vmatprep.subr.mxu0 0.0
        %908 = vmatpush1.msra.mxu0 %v903
        %909 = vmatprep.subr.mxu0 0.0
        %910 = vmatpush1.msra.mxu0 %v904
        %911 = vmatprep.subr.mxu0 0.0
        %912 = vmatpush1.msra.mxu0 %v905
        %913 = vmatprep.subr.mxu0 0.0
        %914 = vmatpush1.msra.mxu0 %v906
        %915 = vmatprep.subr.mxu0 0.0
        %916 = vmatpush1.msra.mxu0 0.0
        %917 = vmatprep.subr.mxu0 0.0
        %918 = vmatpush1.msra.mxu0 0.0
        %919 = vmatprep.subr.mxu0 0.0
        %920 = vmatpush1.msra.mxu0 0.0
        %921 = vmatprep.subr.mxu0 0.0
        %922 = vmatpush1.msra.mxu0 0.0
        %923 = vmatprep.subr.mxu0 0.0
        %924 = vmatpush1.msra.mxu0 0.0
        %925 = vmatprep.subr.mxu0 0.0
        %926 = vmatpush1.msra.mxu0 0.0
        %927 = vmatprep.subr.mxu0 0.0
        %928 = vmatpush1.msra.mxu0 0.0
        %929 = vmatprep.subr.mxu0 0.0
        %930 = vmatpush1.msra.mxu0 0.0
        %931 = vmatprep.subr.mxu0 0.0
        %932 = vmatpush1.msra.mxu0 0.0
        %933 = vmatprep.subr.mxu0 0.0
        %934 = vmatpush1.msra.mxu0 0.0
        %935 = vmatprep.subr.mxu0 0.0
        %936 = vmatpush1.msra.mxu0 0.0
        %937 = vmatprep.subr.mxu0 0.0
        %938 = vmatpush1.msra.mxu0 0.0
        %939 = vmatprep.subr.mxu0 0.0
        %940 = vmatpush1.msra.mxu0 0.0
        %941 = vmatprep.subr.mxu0 0.0
        %942 = vmatpush1.msra.mxu0 0.0
        %943 = vmatprep.subr.mxu0 0.0
        %944 = vmatpush1.msra.mxu0 0.0
        %945 = vmatprep.subr.mxu0 0.0
        %946 = vmatpush1.msra.mxu0 0.0
        %947 = vmatprep.subr.mxu0 0.0
        %948 = vmatpush1.msra.mxu0 0.0
        %949 = vmatprep.subr.mxu0 0.0
        %950 = vmatpush1.msra.mxu0 0.0
        %951 = vmatprep.subr.mxu0 0.0
        %952 = vmatpush1.msra.mxu0 0.0
        %953 = vmatprep.subr.mxu0 0.0
        %954 = vmatpush1.msra.mxu0 0.0
        %955 = vmatprep.subr.mxu0 0.0
        %956 = vmatpush1.msra.mxu0 0.0
        %957 = vmatprep.subr.mxu0 0.0
        %958 = vmatpush1.msra.mxu0 0.0
        %959 = vmatprep.subr.mxu0 0.0
        %960 = vmatpush1.msra.mxu0 0.0
        %961 = vmatprep.subr.mxu0 0.0
        %962 = vmatpush1.msra.mxu0 0.0
        %963 = vmatprep.subr.mxu0 0.0
        %964 = vmatpush1.msra.mxu0 0.0
        %965 = vmatprep.subr.mxu0 0.0
        %966 = vmatpush1.msra.mxu0 0.0
        %967 = vmatprep.subr.mxu0 0.0
        %968 = vmatpush1.msra.mxu0 0.0
        %969 = vmatprep.subr.mxu0 0.0
        %970 = vmatpush1.msra.mxu0 0.0
        %971 = vmatprep.mubr.f32.mxu0 0.0
        %972 = vmatmul.mubr.f32.gmra.mrb[0].mxu0 %v683
        %v973 = vpop.f32.mrb[0].mxu0
        %v974 = vadd.f32 0.0, %v973
        %v975 = vpop.f32.mrb[0].mxu0
        %976 = vmatprep.mubr.f32.mxu0 0.0
        %977 = vmatmul.mubr.f32.gmra.mrb[0].mxu0 %v686
        %v978 = vpop.f32.mrb[0].mxu0
        %v979 = vadd.f32 0.0, %v978
        %v980 = vpop.f32.mrb[0].mxu0
        %981 = vmatprep.mubr.f32.mxu0 0.0
        %982 = vmatmul.mubr.f32.gmra.mrb[0].mxu0 %v689
        %v983 = vpop.f32.mrb[0].mxu0
        %v984 = vadd.f32 0.0, %v983
        %v985 = vpop.f32.mrb[0].mxu0
        %986 = vmatprep.mubr.f32.mxu0 0.0
        %987 = vmatmul.mubr.f32.gmra.mrb[0].mxu0 %v692
        %v988 = vpop.f32.mrb[0].mxu0
        %v989 = vadd.f32 0.0, %v988
        %v990 = vpop.f32.mrb[0].mxu0
        %991 = vmatprep.mubr.f32.mxu0 0.0
        %992 = vmatmul.mubr.f32.gmra.mrb[0].mxu0 %v695
        %v993 = vpop.f32.mrb[0].mxu0
        %v994 = vadd.f32 0.0, %v993
        %v995 = vpop.f32.mrb[0].mxu0
        %996 = vmatprep.mubr.f32.mxu0 0.0
        %997 = vmatmul.mubr.f32.gmra.mrb[0].mxu0 %v698
        %v998 = vpop.f32.mrb[0].mxu0
        %v999 = vadd.f32 0.0, %v998
        %v1000 = vpop.f32.mrb[0].mxu0
        %1001 = vmatprep.mubr.f32.mxu0 0.0
        %1002 = vmatmul.mubr.f32.gmra.mrb[0].mxu0 %v701
        %v1003 = vpop.f32.mrb[0].mxu0
        %v1004 = vadd.f32 0.0, %v1003
        %v1005 = vpop.f32.mrb[0].mxu0
        %1006 = vmatprep.mubr.f32.mxu0 0.0
        %1007 = vmatmul.mubr.f32.gmra.mrb[0].mxu0 %v704
        %v1008 = vpop.f32.mrb[0].mxu0
        %v1009 = vadd.f32 0.0, %v1008
        %v1010 = vpop.f32.mrb[0].mxu0
        %1011 = vmatprep.mubr.f32.mxu0 0.0
        %1012 = vmatmul.mubr.f32.gmra.mrb[0].mxu0 %v707
        %v1013 = vpop.f32.mrb[0].mxu0
        %v1014 = vadd.f32 0.0, %v1013
        %v1015 = vpop.f32.mrb[0].mxu0
        %1016 = vmatprep.mubr.f32.mxu0 0.0
        %1017 = vmatmul.mubr.f32.gmra.mrb[0].mxu0 %v710
        %v1018 = vpop.f32.mrb[0].mxu0
        %v1019 = vadd.f32 0.0, %v1018
        %v1020 = vpop.f32.mrb[0].mxu0
        %1021 = vmatprep.mubr.f32.mxu0 0.0
        %1022 = vmatmul.mubr.f32.gmra.mrb[0].mxu0 %v713
        %v1023 = vpop.f32.mrb[0].mxu0
        %v1024 = vadd.f32 0.0, %v1023
        %v1025 = vpop.f32.mrb[0].mxu0
        %1026 = vmatprep.mubr.f32.mxu0 0.0
        %1027 = vmatmul.mubr.f32.gmra.mrb[0].mxu0 %v716
        %v1028 = vpop.f32.mrb[0].mxu0
        %v1029 = vadd.f32 0.0, %v1028
        %v1030 = vpop.f32.mrb[0].mxu0
        %1031 = vdwg.mxu0
        %v1032 = vld [vmem:[%s549] sm:$0xff]
        %v1033 = vld [vmem:[%s549 + $0x8] sm:$0xff]
        %v1034 = vld [vmem:[%s549 + $0x10] sm:$0xff]
        %v1035 = vld [vmem:[%s549 + $0x18] sm:$0xff]
        %v1036 = vld [vmem:[#allocation10] sm:$0xff]
        %v1037 = vld [vmem:[#allocation10 + $0x8] sm:$0xff]
        %v1038 = vld [vmem:[#allocation10 + $0x10] sm:$0xff]
        %v1039 = vld [vmem:[#allocation10 + $0x18] sm:$0xff]
        %v1040 = vld [vmem:[#allocation11] sm:$0xff]
        %v1041 = vld [vmem:[#allocation11 + $0x8] sm:$0xff]
        %v1042 = vld [vmem:[#allocation11 + $0x10] sm:$0xff]
        %v1043 = vld [vmem:[#allocation11 + $0x18] sm:$0xff]
        %v1045 = vsel %vm681, %v881, 0
        %v1048 = vsel %vm681, %v888, 0
        %v1051 = vsel %vm681, %v895, 0
        %v1054 = vsel %vm681, %v902, 0
        %1056 = vmatprep.subr.mxu0 0.0
        %1057 = vmatpush1.msra.mxu0 %v1040
        %1058 = vmatprep.subr.mxu0 0.0
        %1059 = vmatpush1.msra.mxu0 %v1041
        %1060 = vmatprep.subr.mxu0 0.0
        %1061 = vmatpush1.msra.mxu0 %v1042
        %1062 = vmatprep.subr.mxu0 0.0
        %1063 = vmatpush1.msra.mxu0 %v1043
        %1064 = vmatprep.subr.mxu0 0.0
        %1065 = vmatpush1.msra.mxu0 0.0
        %1066 = vmatprep.subr.mxu0 0.0
        %1067 = vmatpush1.msra.mxu0 0.0
        %1068 = vmatprep.subr.mxu0 0.0
        %1069 = vmatpush1.msra.mxu0 0.0
        %1070 = vmatprep.subr.mxu0 0.0
        %1071 = vmatpush1.msra.mxu0 0.0
        %1072 = vmatprep.subr.mxu0 0.0
        %1073 = vmatpush1.msra.mxu0 0.0
        %1074 = vmatprep.subr.mxu0 0.0
        %1075 = vmatpush1.msra.mxu0 0.0
        %1076 = vmatprep.subr.mxu0 0.0
        %1077 = vmatpush1.msra.mxu0 0.0
        %1078 = vmatprep.subr.mxu0 0.0
        %1079 = vmatpush1.msra.mxu0 0.0
        %1080 = vmatprep.subr.mxu0 0.0
        %1081 = vmatpush1.msra.mxu0 0.0
        %1082 = vmatprep.subr.mxu0 0.0
        %1083 = vmatpush1.msra.mxu0 0.0
        %1084 = vmatprep.subr.mxu0 0.0
        %1085 = vmatpush1.msra.mxu0 0.0
        %1086 = vmatprep.subr.mxu0 0.0
        %1087 = vmatpush1.msra.mxu0 0.0
        %1088 = vmatprep.subr.mxu0 0.0
        %1089 = vmatpush1.msra.mxu0 0.0
        %1090 = vmatprep.subr.mxu0 0.0
        %1091 = vmatpush1.msra.mxu0 0.0
        %1092 = vmatprep.subr.mxu0 0.0
        %1093 = vmatpush1.msra.mxu0 0.0
        %1094 = vmatprep.subr.mxu0 0.0
        %1095 = vmatpush1.msra.mxu0 0.0
        %1096 = vmatprep.subr.mxu0 0.0
        %1097 = vmatpush1.msra.mxu0 0.0
        %1098 = vmatprep.subr.mxu0 0.0
        %1099 = vmatpush1.msra.mxu0 0.0
        %1100 = vmatprep.subr.mxu0 0.0
        %1101 = vmatpush1.msra.mxu0 0.0
        %1102 = vmatprep.subr.mxu0 0.0
        %1103 = vmatpush1.msra.mxu0 0.0
        %1104 = vmatprep.subr.mxu0 0.0
        %1105 = vmatpush1.msra.mxu0 0.0
        %1106 = vmatprep.subr.mxu0 0.0
        %1107 = vmatpush1.msra.mxu0 0.0
        %1108 = vmatprep.subr.mxu0 0.0
        %1109 = vmatpush1.msra.mxu0 0.0
        %1110 = vmatprep.subr.mxu0 0.0
        %1111 = vmatpush1.msra.mxu0 0.0
        %1112 = vmatprep.subr.mxu0 0.0
        %1113 = vmatpush1.msra.mxu0 0.0
        %1114 = vmatprep.subr.mxu0 0.0
        %1115 = vmatpush1.msra.mxu0 0.0
        %1116 = vmatprep.subr.mxu0 0.0
        %1117 = vmatpush1.msra.mxu0 0.0
        %1118 = vmatprep.subr.mxu0 0.0
        %1119 = vmatpush1.msra.mxu0 0.0
        %1120 = vmatprep.mubr.f32.mxu0 0.0
        %1121 = vmatmul.mubr.f32.gmra.mrb[0].mxu0 %v1045
        %v1122 = vpop.f32.mrb[0].mxu0
        %v1123 = vadd.f32 0.0, %v1122
        %v1124 = vpop.f32.mrb[0].mxu0
        %1125 = vmatprep.mubr.f32.mxu0 0.0
        %1126 = vmatmul.mubr.f32.gmra.mrb[0].mxu0 %v1048
        %v1127 = vpop.f32.mrb[0].mxu0
        %v1128 = vadd.f32 0.0, %v1127
        %v1129 = vpop.f32.mrb[0].mxu0
        %1130 = vmatprep.mubr.f32.mxu0 0.0
        %1131 = vmatmul.mubr.f32.gmra.mrb[0].mxu0 %v1051
        %v1132 = vpop.f32.mrb[0].mxu0
        %v1133 = vadd.f32 0.0, %v1132
        %v1134 = vpop.f32.mrb[0].mxu0
        %1135 = vmatprep.mubr.f32.mxu0 0.0
        %1136 = vmatmul.mubr.f32.gmra.mrb[0].mxu0 %v1054
        %v1137 = vpop.f32.mrb[0].mxu0
        %v1138 = vadd.f32 0.0, %v1137
        %v1139 = vpop.f32.mrb[0].mxu0
        %1140 = vdwg.mxu0
        %v1142 = vsel %vm681, %v1032, 0
        %v1145 = vsel %vm681, %v1033, 0
        %v1148 = vsel %vm681, %v1034, 0
        %v1151 = vsel %vm681, %v1035, 0
        %1153 = vmatprep.subr.mxu0 0.0
        %1154 = vmatpush1.msra.mxu0 %v1036
        %1155 = vmatprep.subr.mxu0 0.0
        %1156 = vmatpush1.msra.mxu0 %v1037
        %1157 = vmatprep.subr.mxu0 0.0
        %1158 = vmatpush1.msra.mxu0 %v1038
        %1159 = vmatprep.subr.mxu0 0.0
        %1160 = vmatpush1.msra.mxu0 %v1039
        %1161 = vmatprep.subr.mxu0 0.0
        %1162 = vmatpush1.msra.mxu0 0.0
        %1163 = vmatprep.subr.mxu0 0.0
        %1164 = vmatpush1.msra.mxu0 0.0
        %1165 = vmatprep.subr.mxu0 0.0
        %1166 = vmatpush1.msra.mxu0 0.0
        %1167 = vmatprep.subr.mxu0 0.0
        %1168 = vmatpush1.msra.mxu0 0.0
        %1169 = vmatprep.subr.mxu0 0.0
        %1170 = vmatpush1.msra.mxu0 0.0
        %1171 = vmatprep.subr.mxu0 0.0
        %1172 = vmatpush1.msra.mxu0 0.0
        %1173 = vmatprep.subr.mxu0 0.0
        %1174 = vmatpush1.msra.mxu0 0.0
        %1175 = vmatprep.subr.mxu0 0.0
        %1176 = vmatpush1.msra.mxu0 0.0
        %1177 = vmatprep.subr.mxu0 0.0
        %1178 = vmatpush1.msra.mxu0 0.0
        %1179 = vmatprep.subr.mxu0 0.0
        %1180 = vmatpush1.msra.mxu0 0.0
        %1181 = vmatprep.subr.mxu0 0.0
        %1182 = vmatpush1.msra.mxu0 0.0
        %1183 = vmatprep.subr.mxu0 0.0
        %1184 = vmatpush1.msra.mxu0 0.0
        %1185 = vmatprep.subr.mxu0 0.0
        %1186 = vmatpush1.msra.mxu0 0.0
        %1187 = vmatprep.subr.mxu0 0.0
        %1188 = vmatpush1.msra.mxu0 0.0
        %1189 = vmatprep.subr.mxu0 0.0
        %1190 = vmatpush1.msra.mxu0 0.0
        %1191 = vmatprep.subr.mxu0 0.0
        %1192 = vmatpush1.msra.mxu0 0.0
        %1193 = vmatprep.subr.mxu0 0.0
        %1194 = vmatpush1.msra.mxu0 0.0
        %1195 = vmatprep.subr.mxu0 0.0
        %1196 = vmatpush1.msra.mxu0 0.0
        %1197 = vmatprep.subr.mxu0 0.0
        %1198 = vmatpush1.msra.mxu0 0.0
        %1199 = vmatprep.subr.mxu0 0.0
        %1200 = vmatpush1.msra.mxu0 0.0
        %1201 = vmatprep.subr.mxu0 0.0
        %1202 = vmatpush1.msra.mxu0 0.0
        %1203 = vmatprep.subr.mxu0 0.0
        %1204 = vmatpush1.msra.mxu0 0.0
        %1205 = vmatprep.subr.mxu0 0.0
        %1206 = vmatpush1.msra.mxu0 0.0
        %1207 = vmatprep.subr.mxu0 0.0
        %1208 = vmatpush1.msra.mxu0 0.0
        %1209 = vmatprep.subr.mxu0 0.0
        %1210 = vmatpush1.msra.mxu0 0.0
        %1211 = vmatprep.subr.mxu0 0.0
        %1212 = vmatpush1.msra.mxu0 0.0
        %1213 = vmatprep.subr.mxu0 0.0
        %1214 = vmatpush1.msra.mxu0 0.0
        %1215 = vmatprep.subr.mxu0 0.0
        %1216 = vmatpush1.msra.mxu0 0.0
        %1217 = vmatprep.mubr.f32.mxu0 0.0
        %1218 = vmatmul.mubr.f32.gmra.mrb[0].mxu0 %v1142
        %v1219 = vpop.f32.mrb[0].mxu0
        %v1220 = vadd.f32 %v1123, %v1219
        %v1221 = vpop.f32.mrb[0].mxu0
        %1222 = vmatprep.mubr.f32.mxu0 0.0
        %1223 = vmatmul.mubr.f32.gmra.mrb[0].mxu0 %v1145
        %v1224 = vpop.f32.mrb[0].mxu0
        %v1225 = vadd.f32 %v1128, %v1224
        %v1226 = vpop.f32.mrb[0].mxu0
        %1227 = vmatprep.mubr.f32.mxu0 0.0
        %1228 = vmatmul.mubr.f32.gmra.mrb[0].mxu0 %v1148
        %v1229 = vpop.f32.mrb[0].mxu0
        %v1230 = vadd.f32 %v1133, %v1229
        %v1231 = vpop.f32.mrb[0].mxu0
        %1232 = vmatprep.mubr.f32.mxu0 0.0
        %1233 = vmatmul.mubr.f32.gmra.mrb[0].mxu0 %v1151
        %v1234 = vpop.f32.mrb[0].mxu0
        %v1235 = vadd.f32 %v1138, %v1234
        %v1236 = vpop.f32.mrb[0].mxu0
        %1237 = vdwg.mxu0
        %v1238 = vld [vmem:[#allocation13] sm:$0x1]
        %v1240 = vlaneseq
        %v1241 = vshrl.u32 %v1240, 7
        %v1242 = vsub.s32 0, %v1241
        %v1243 = vrot.slane %v1238, %v1242
        %v1245 = vadd.f32 %v1220, %v1243
        %v1246 = vadd.f32 %v1225, %v1243
        %v1247 = vadd.f32 %v1230, %v1243
        %v1248 = vadd.f32 %v1235, %v1243
        %v1249 = vxor.u32 %v1245, 2147483648
        %v1250 = vxor.u32 %v1246, 2147483648
        %v1251 = vxor.u32 %v1247, 2147483648
        %v1252 = vxor.u32 %v1248, 2147483648
        %v1253 = vmul.f32 %v1249, 1.442695
        %v1254 = vpow.pop %v1253
        %v1255 = vmul.f32 %v1250, 1.442695
        %v1256 = vpow.pop %v1255
        %v1257 = vmul.f32 %v1251, 1.442695
        %v1258 = vpow.pop %v1257
        %v1259 = vmul.f32 %v1252, 1.442695
        %v1260 = vpow.pop %v1259
        %v1261 = vadd.f32 %v1254, 1.0
        %v1262 = vadd.f32 %v1256, 1.0
        %v1263 = vadd.f32 %v1258, 1.0
        %v1264 = vadd.f32 %v1260, 1.0
        %v1265 = vrcp.pop %v1261
        %v1266 = vmul.f32 1.0, %v1265
        %v1267 = vrcp.pop %v1262
        %v1268 = vmul.f32 1.0, %v1267
        %v1269 = vrcp.pop %v1263
        %v1270 = vmul.f32 1.0, %v1269
        %v1271 = vrcp.pop %v1264
        %v1272 = vmul.f32 1.0, %v1271
        %v1273 = vmul.f32 %v1245, %v1266
        %v1274 = vmul.f32 %v1246, %v1268
        %v1275 = vmul.f32 %v1247, %v1270
        %v1276 = vmul.f32 %v1248, %v1272
        %v1277 = vld [vmem:[#allocation14] sm:$0xff]
        %v1278 = vld [vmem:[#allocation14 + $0x8] sm:$0xff]
        %v1279 = vld [vmem:[#allocation14 + $0x10] sm:$0xff]
        %v1280 = vld [vmem:[#allocation14 + $0x18] sm:$0xff]
        %v1281 = vld [vmem:[#allocation17] sm:$0x1]
        %v1283 = vlaneseq
        %v1284 = vshrl.u32 %v1283, 7
        %v1285 = vsub.s32 0, %v1284
        %v1286 = vrot.slane %v1281, %v1285
        %v1289 = vsel %vm681, %v1273, 0
        %v1292 = vsel %vm681, %v1274, 0
        %v1295 = vsel %vm681, %v1275, 0
        %v1298 = vsel %vm681, %v1276, 0
        %1300 = vmatprep.subr.mxu0 0.0
        %1301 = vmatpush1.msra.mxu0 %v1277
        %1302 = vmatprep.subr.mxu0 0.0
        %1303 = vmatpush1.msra.mxu0 %v1278
        %1304 = vmatprep.subr.mxu0 0.0
        %1305 = vmatpush1.msra.mxu0 %v1279
        %1306 = vmatprep.subr.mxu0 0.0
        %1307 = vmatpush1.msra.mxu0 %v1280
        %1308 = vmatprep.subr.mxu0 0.0
        %1309 = vmatpush1.msra.mxu0 0.0
        %1310 = vmatprep.subr.mxu0 0.0
        %1311 = vmatpush1.msra.mxu0 0.0
        %1312 = vmatprep.subr.mxu0 0.0
        %1313 = vmatpush1.msra.mxu0 0.0
        %1314 = vmatprep.subr.mxu0 0.0
        %1315 = vmatpush1.msra.mxu0 0.0
        %1316 = vmatprep.subr.mxu0 0.0
        %1317 = vmatpush1.msra.mxu0 0.0
        %1318 = vmatprep.subr.mxu0 0.0
        %1319 = vmatpush1.msra.mxu0 0.0
        %1320 = vmatprep.subr.mxu0 0.0
        %1321 = vmatpush1.msra.mxu0 0.0
        %1322 = vmatprep.subr.mxu0 0.0
        %1323 = vmatpush1.msra.mxu0 0.0
        %1324 = vmatprep.subr.mxu0 0.0
        %1325 = vmatpush1.msra.mxu0 0.0
        %1326 = vmatprep.subr.mxu0 0.0
        %1327 = vmatpush1.msra.mxu0 0.0
        %1328 = vmatprep.subr.mxu0 0.0
        %1329 = vmatpush1.msra.mxu0 0.0
        %1330 = vmatprep.subr.mxu0 0.0
        %1331 = vmatpush1.msra.mxu0 0.0
        %1332 = vmatprep.subr.mxu0 0.0
        %1333 = vmatpush1.msra.mxu0 0.0
        %1334 = vmatprep.subr.mxu0 0.0
        %1335 = vmatpush1.msra.mxu0 0.0
        %1336 = vmatprep.subr.mxu0 0.0
        %1337 = vmatpush1.msra.mxu0 0.0
        %1338 = vmatprep.subr.mxu0 0.0
        %1339 = vmatpush1.msra.mxu0 0.0
        %1340 = vmatprep.subr.mxu0 0.0
        %1341 = vmatpush1.msra.mxu0 0.0
        %1342 = vmatprep.subr.mxu0 0.0
        %1343 = vmatpush1.msra.mxu0 0.0
        %1344 = vmatprep.subr.mxu0 0.0
        %1345 = vmatpush1.msra.mxu0 0.0
        %1346 = vmatprep.subr.mxu0 0.0
        %1347 = vmatpush1.msra.mxu0 0.0
        %1348 = vmatprep.subr.mxu0 0.0
        %1349 = vmatpush1.msra.mxu0 0.0
        %1350 = vmatprep.subr.mxu0 0.0
        %1351 = vmatpush1.msra.mxu0 0.0
        %1352 = vmatprep.subr.mxu0 0.0
        %1353 = vmatpush1.msra.mxu0 0.0
        %1354 = vmatprep.subr.mxu0 0.0
        %1355 = vmatpush1.msra.mxu0 0.0
        %1356 = vmatprep.subr.mxu0 0.0
        %1357 = vmatpush1.msra.mxu0 0.0
        %1358 = vmatprep.subr.mxu0 0.0
        %1359 = vmatpush1.msra.mxu0 0.0
        %1360 = vmatprep.subr.mxu0 0.0
        %1361 = vmatpush1.msra.mxu0 0.0
        %1362 = vmatprep.subr.mxu0 0.0
        %1363 = vmatpush1.msra.mxu0 0.0
        %1364 = vmatprep.mubr.f32.mxu0 0.0
        %1365 = vmatmul.mubr.f32.gmra.mrb[0].mxu0 %v1289
        %v1366 = vpop.f32.mrb[0].mxu0
        %v1367 = vadd.f32 %v1286, %v1366
        %v1368 = vpop.f32.mrb[0].mxu0
        %1369 = vmatprep.mubr.f32.mxu0 0.0
        %1370 = vmatmul.mubr.f32.gmra.mrb[0].mxu0 %v1292
        %v1371 = vpop.f32.mrb[0].mxu0
        %v1372 = vadd.f32 %v1286, %v1371
        %v1373 = vpop.f32.mrb[0].mxu0
        %1374 = vmatprep.mubr.f32.mxu0 0.0
        %1375 = vmatmul.mubr.f32.gmra.mrb[0].mxu0 %v1295
        %v1376 = vpop.f32.mrb[0].mxu0
        %v1377 = vadd.f32 %v1286, %v1376
        %v1378 = vpop.f32.mrb[0].mxu0
        %1379 = vmatprep.mubr.f32.mxu0 0.0
        %1380 = vmatmul.mubr.f32.gmra.mrb[0].mxu0 %v1298
        %v1381 = vpop.f32.mrb[0].mxu0
        %v1382 = vadd.f32 %v1286, %v1381
        %v1383 = vpop.f32.mrb[0].mxu0
        %1384 = vdwg.mxu0
        %v1385 = vld [vmem:[#allocation16] sm:$0xff]
        %v1386 = vld [vmem:[#allocation16 + $0x8] sm:$0xff]
        %v1387 = vld [vmem:[#allocation16 + $0x10] sm:$0xff]
        %v1388 = vld [vmem:[#allocation16 + $0x18] sm:$0xff]
        %v1389 = vld [vmem:[#allocation19] sm:$0x1]
        %v1391 = vlaneseq
        %v1392 = vshrl.u32 %v1391, 7
        %v1393 = vsub.s32 0, %v1392
        %v1394 = vrot.slane %v1389, %v1393
        %1396 = vmatprep.subr.mxu0 0.0
        %1397 = vmatpush1.msra.mxu0 %v1385
        %1398 = vmatprep.subr.mxu0 0.0
        %1399 = vmatpush1.msra.mxu0 %v1386
        %1400 = vmatprep.subr.mxu0 0.0
        %1401 = vmatpush1.msra.mxu0 %v1387
        %1402 = vmatprep.subr.mxu0 0.0
        %1403 = vmatpush1.msra.mxu0 %v1388
        %1404 = vmatprep.subr.mxu0 0.0
        %1405 = vmatpush1.msra.mxu0 0.0
        %1406 = vmatprep.subr.mxu0 0.0
        %1407 = vmatpush1.msra.mxu0 0.0
        %1408 = vmatprep.subr.mxu0 0.0
        %1409 = vmatpush1.msra.mxu0 0.0
        %1410 = vmatprep.subr.mxu0 0.0
        %1411 = vmatpush1.msra.mxu0 0.0
        %1412 = vmatprep.subr.mxu0 0.0
        %1413 = vmatpush1.msra.mxu0 0.0
        %1414 = vmatprep.subr.mxu0 0.0
        %1415 = vmatpush1.msra.mxu0 0.0
        %1416 = vmatprep.subr.mxu0 0.0
        %1417 = vmatpush1.msra.mxu0 0.0
        %1418 = vmatprep.subr.mxu0 0.0
        %1419 = vmatpush1.msra.mxu0 0.0
        %1420 = vmatprep.subr.mxu0 0.0
        %1421 = vmatpush1.msra.mxu0 0.0
        %1422 = vmatprep.subr.mxu0 0.0
        %1423 = vmatpush1.msra.mxu0 0.0
        %1424 = vmatprep.subr.mxu0 0.0
        %1425 = vmatpush1.msra.mxu0 0.0
        %1426 = vmatprep.subr.mxu0 0.0
        %1427 = vmatpush1.msra.mxu0 0.0
        %1428 = vmatprep.subr.mxu0 0.0
        %1429 = vmatpush1.msra.mxu0 0.0
        %1430 = vmatprep.subr.mxu0 0.0
        %1431 = vmatpush1.msra.mxu0 0.0
        %1432 = vmatprep.subr.mxu0 0.0
        %1433 = vmatpush1.msra.mxu0 0.0
        %1434 = vmatprep.subr.mxu0 0.0
        %1435 = vmatpush1.msra.mxu0 0.0
        %1436 = vmatprep.subr.mxu0 0.0
        %1437 = vmatpush1.msra.mxu0 0.0
        %1438 = vmatprep.subr.mxu0 0.0
        %1439 = vmatpush1.msra.mxu0 0.0
        %1440 = vmatprep.subr.mxu0 0.0
        %1441 = vmatpush1.msra.mxu0 0.0
        %1442 = vmatprep.subr.mxu0 0.0
        %1443 = vmatpush1.msra.mxu0 0.0
        %1444 = vmatprep.subr.mxu0 0.0
        %1445 = vmatpush1.msra.mxu0 0.0
        %1446 = vmatprep.subr.mxu0 0.0
        %1447 = vmatpush1.msra.mxu0 0.0
        %1448 = vmatprep.subr.mxu0 0.0
        %1449 = vmatpush1.msra.mxu0 0.0
        %1450 = vmatprep.subr.mxu0 0.0
        %1451 = vmatpush1.msra.mxu0 0.0
        %1452 = vmatprep.subr.mxu0 0.0
        %1453 = vmatpush1.msra.mxu0 0.0
        %1454 = vmatprep.subr.mxu0 0.0
        %1455 = vmatpush1.msra.mxu0 0.0
        %1456 = vmatprep.subr.mxu0 0.0
        %1457 = vmatpush1.msra.mxu0 0.0
        %1458 = vmatprep.subr.mxu0 0.0
        %1459 = vmatpush1.msra.mxu0 0.0
        %1460 = vmatprep.mubr.f32.mxu0 0.0
        %1461 = vmatmul.mubr.f32.gmra.mrb[0].mxu0 %v1289
        %v1462 = vpop.f32.mrb[0].mxu0
        %v1463 = vadd.f32 %v1394, %v1462
        %v1464 = vpop.f32.mrb[0].mxu0
        %1465 = vmatprep.mubr.f32.mxu0 0.0
        %1466 = vmatmul.mubr.f32.gmra.mrb[0].mxu0 %v1292
        %v1467 = vpop.f32.mrb[0].mxu0
        %v1468 = vadd.f32 %v1394, %v1467
        %v1469 = vpop.f32.mrb[0].mxu0
        %1470 = vmatprep.mubr.f32.mxu0 0.0
        %1471 = vmatmul.mubr.f32.gmra.mrb[0].mxu0 %v1295
        %v1472 = vpop.f32.mrb[0].mxu0
        %v1473 = vadd.f32 %v1394, %v1472
        %v1474 = vpop.f32.mrb[0].mxu0
        %1475 = vmatprep.mubr.f32.mxu0 0.0
        %1476 = vmatmul.mubr.f32.gmra.mrb[0].mxu0 %v1298
        %v1477 = vpop.f32.mrb[0].mxu0
        %v1478 = vadd.f32 %v1394, %v1477
        %v1479 = vpop.f32.mrb[0].mxu0
        %1480 = vdwg.mxu0
        %vm1481 = vcmask 130048
        %1482 = vst.msk [vmem:[%s637] sm:$0xff] %vm1481, %v1367
        %1483 = vst.msk [vmem:[%s637 + $0x8] sm:$0xff] %vm1481, %v1372
        %1484 = vst.msk [vmem:[%s637 + $0x10] sm:$0xff] %vm1481, %v1377
        %1485 = vst.msk [vmem:[%s637 + $0x18] sm:$0xff] %vm1481, %v1382
        %v1486 = vmul.f32 %v1463, %v974
        %v1487 = vmul.f32 %v1468, %v979
        %v1488 = vmul.f32 %v1473, %v984
        %v1489 = vmul.f32 %v1478, %v989
        %v1490 = vmul.f32 %v1463, %v994
        %v1491 = vmul.f32 %v1468, %v999
        %v1492 = vmul.f32 %v1473, %v1004
        %v1493 = vmul.f32 %v1478, %v1009
        %v1494 = vmul.f32 %v1463, %v1014
        %v1495 = vmul.f32 %v1468, %v1019
        %v1496 = vmul.f32 %v1473, %v1024
        %v1497 = vmul.f32 %v1478, %v1029
        %1498 = vst.msk [vmem:[%s644] sm:$0xff] %vm1481, %v1486
        %1499 = vst.msk [vmem:[%s644 + $0x8] sm:$0xff] %vm1481, %v1487
        %1500 = vst.msk [vmem:[%s644 + $0x10] sm:$0xff] %vm1481, %v1488
        %1501 = vst.msk [vmem:[%s644 + $0x18] sm:$0xff] %vm1481, %v1489
        %1502 = vst.msk [vmem:[%s644 + $0x20] sm:$0xff] %vm1481, %v1490
        %1503 = vst.msk [vmem:[%s644 + $0x28] sm:$0xff] %vm1481, %v1491
        %1504 = vst.msk [vmem:[%s644 + $0x30] sm:$0xff] %vm1481, %v1492
        %1505 = vst.msk [vmem:[%s644 + $0x38] sm:$0xff] %vm1481, %v1493
        %1506 = vst.msk [vmem:[%s644 + $0x40] sm:$0xff] %vm1481, %v1494
        %1507 = vst.msk [vmem:[%s644 + $0x48] sm:$0xff] %vm1481, %v1495
        %1508 = vst.msk [vmem:[%s644 + $0x50] sm:$0xff] %vm1481, %v1496
        %1509 = vst.msk [vmem:[%s644 + $0x58] sm:$0xff] %vm1481, %v1497
        %s1510 = sand.u32 %s289, 1
        %s1511 = scalar_lea.sflag [#allocation4], %s1510
        %s1512 = sand.u32 %s289, 1
        %s1513 = smul.addr %s1512, 32
        %s1514 = scalar_lea.vmem [#allocation20], %s1513
        %s1515 = sand.u32 %s315, 1
        %s1516 = scalar_lea.sflag [#allocation22], %s1515
        %s1517 = sand.u32 %s315, 1
        %s1518 = smul.addr %s1517, 96
        %s1519 = scalar_lea.vmem [#allocation21], %s1518
        // Predicated region
        $region109: #{tpu_custom_call.1} parent=63 // pred_check
          %p1520 = pneg %p299
        $region110: #{tpu_custom_call.1} parent=63 // pred_check_branch
          %1522 = sbr.rel (%p1520) target = $region112
        $region111: #{tpu_custom_call.1} parent=63 // pred_region
          %s1523 = smul.u32 4, %s40
          %s1524 = ssub.s32 7, %s1523
          %p1525 = scmp.lt.s32.totalorder %s1524, 4
          %s1526 = scalar_select %p1525, %s1524, 4
          %s1527 = smul.u32 128, %s1526
          %s1529 = ssub.s32 512, %s1527
          %1530 = vsyncadd %s1511, %s1529
          %p1531 = scmp.ne.s32.totalorder 0, %s1527
          %s1532 = smul.addr %s1523, 128
          %s1533 = scalar_lea.hbm %s11, %s1532
          %s1534 = smul.u32 8, %s1526
          %s1535 = sshll.u32 %s1514, 4
          %s1536 = int_to_ptr.vmem [resolvable:$true] %s1535
          %s1537 = sshll.u32 %s1534, 4
          %1541 = dma.vmem_to_hbm [thread:$0]  (%p1531), %s1536, %s1537, %s1533, %s1511, 128, 128, 8
        $region112: #{tpu_custom_call.1} parent=63 // pred_fallthru
          _
        // Predicated region
        $region113: #{tpu_custom_call.1} parent=63 // pred_check
          %p1542 = pneg %p325
        $region114: #{tpu_custom_call.1} parent=63 // pred_check_branch
          %1544 = sbr.rel (%p1542) target = $region116
        $region115: #{tpu_custom_call.1} parent=63 // pred_region
          #allocation26 [shape = 'u32[6]{0}', space=smem, size = 0x18, scoped, tag = 'DMA stride descriptor']
          %s1545 = smul.u32 4, %s40
          %s1546 = ssub.s32 7, %s1545
          %p1547 = scmp.lt.s32.totalorder %s1546, 4
          %s1548 = scalar_select %p1547, %s1546, 4
          %s1549 = smul.u32 384, %s1548
          %s1551 = ssub.s32 1536, %s1549
          %1552 = vsyncadd %s1516, %s1551
          %p1553 = scmp.ne.s32.totalorder 0, %s1549
          %s1554 = smul.addr %s1545, 128
          %s1555 = scalar_lea.hbm %s12, %s1554
          %s1556 = smul.u32 8, %s1548
          %s1557 = smul.u32 %s1556, 3
          %s1559 = sshll.u32 1, 14
          %s1560 = sxor.u32 4294967295, %s1559
          %s1563 = sshll.u32 7, 18
          %s1564 = sxor.u32 4294967295, %s1563
          %s1565 = sand.u32 0, %s1564
          %s1567 = sor.u32 %s1565, 0
          %s1569 = sshll.u32 3, 24
          %s1570 = sxor.u32 4294967295, %s1569
          %s1571 = sand.u32 %s1567, %s1570
          %s1573 = sor.u32 %s1571, 0
          %s1574 = sshll.u32 %s1519, 4
          %s1575 = int_to_ptr.vmem [resolvable:$true] %s1574
          %s1576 = sshll.u32 %s1557, 4
          %1581 = sst [smem:[#allocation26]] 512
          %s1582 = scalar_lea.smem [#allocation26], 1
          %1583 = sst [smem:[%s1582]] 896
          %s1584 = scalar_lea.smem [#allocation26], 2
          %1585 = sst [smem:[%s1584]] %s1548
          %s1586 = scalar_lea.smem [#allocation26], 3
          %1587 = sst [smem:[%s1586]] 128
          %s1588 = scalar_lea.smem [#allocation26], 4
          %1589 = sst [smem:[%s1588]] 128
          %s1590 = scalar_lea.smem [#allocation26], 5
          %1591 = sst [smem:[%s1590]] 8
          %1593 = dma.general (%p1553), %s1575, %s1576, %s1555, %s1516, [#allocation25], [#allocation26], %s1573, 0
        $region116: #{tpu_custom_call.1} parent=63 // pred_fallthru
          _
      $region64: #{tpu_custom_call.1} parent=5 // pred_fallthru
        _
      %p1594 = scmp.le.s32.totalorder 2, %s35
      // Predicated region
      $region117: #{tpu_custom_call.1} parent=5 // pred_check
        %p1595 = pneg %p1594
      $region118: #{tpu_custom_call.1} parent=5 // pred_check_branch
        %1597 = sbr.rel (%p1595) target = $region120
      $region119: #{tpu_custom_call.1} parent=5 // pred_region
        %s1598 = ssub.s32 %s35, 2
        // Predicated region
        $region121: #{tpu_custom_call.1} parent=119 // pred_check
          %p1599 = pneg %p305
        $region122: #{tpu_custom_call.1} parent=119 // pred_check_branch
          %1601 = sbr.rel (%p1599) target = $region124
        $region123: #{tpu_custom_call.1} parent=119 // pred_region
          %s1602 = sand.u32 %s290, 1
          %s1603 = scalar_lea.sflag [#allocation4], %s1602
          %s1604 = sand.u32 %s290, 1
          %s1605 = smul.addr %s1604, 32
          %s1606 = scalar_lea.vmem [#allocation20], %s1605
          %1607 = dma.done %s1603, 512
        $region124: #{tpu_custom_call.1} parent=119 // pred_fallthru
          _
        // Predicated region
        $region125: #{tpu_custom_call.1} parent=119 // pred_check
          %p1608 = pneg %p331
        $region126: #{tpu_custom_call.1} parent=119 // pred_check_branch
          %1610 = sbr.rel (%p1608) target = $region128
        $region127: #{tpu_custom_call.1} parent=119 // pred_region
          %s1611 = sand.u32 %s316, 1
          %s1612 = scalar_lea.sflag [#allocation22], %s1611
          %s1613 = sand.u32 %s316, 1
          %s1614 = smul.addr %s1613, 96
          %s1615 = scalar_lea.vmem [#allocation21], %s1614
          %1616 = dma.done %s1612, 1536
        $region128: #{tpu_custom_call.1} parent=119 // pred_fallthru
          _
      $region120: #{tpu_custom_call.1} parent=5 // pred_fallthru
        _
    $region6: #{tpu_custom_call.1} parent=1 // loop_footer
      %s39 = sadd.s32 1, %s35
    $region7: #{tpu_custom_call.1} parent=1 // loop_footer_branch
      %34 = sbr.rel target = $region3
    $region8: #{tpu_custom_call.1} parent=1 // loop_exit
      _
    %1617 = vsyncpa [#allocation3], 1
    %s1618 = scalar_lea.sflag [#allocation3], 1
    %1619 = vsyncpa %s1618, 1
    %1620 = vsyncpa [#allocation6], 1
    %s1621 = scalar_lea.sflag [#allocation6], 1
    %1622 = vsyncpa %s1621, 1
    %1623 = vsyncpa [#allocation9], 1
    %1624 = vsyncpa [#allocation12], 1
    %1625 = vsyncpa [#allocation15], 1
    %1626 = vsyncpa [#allocation18], 1
    %1627 = vsyncpa [#allocation4], 1
    %s1628 = scalar_lea.sflag [#allocation4], 1
    %1629 = vsyncpa %s1628, 1
    %1630 = vsyncpa [#allocation22], 1
    %s1631 = scalar_lea.sflag [#allocation22], 1
    %1632 = vsyncpa %s1631, 1

</llo_original>
